<compile_context>
chip_gen: v7x
topology: tpu7x:2x2x1
jax: 0.10.0
libtpu: 0.0.40
codegen_flags: <defaults>
</compile_context>

<pallas_src>
import functools

import numpy as np
import jax
import jax.numpy as jnp
from jax.experimental import pallas as pl
from jax.experimental.pallas import tpu as pltpu


# Channel layout of the fused 1x1 projection output (channels-first, spatial
# flattened on lanes):
#   rows 0:40   : rela_offset (40 ch)                    -> aligned bf16 output
#   rows 40:48  : "decode slab" (sublane aligned):
#       +0 : center heatmap (sigmoid + clamp)
#       +1 : keypts heatmap (sigmoid + clamp)
#       +2 : pts_offset x      +3 : pts_offset y
#       +4 : int_offset/reg x  +5 : int_offset/reg y
#       +6,+7 : alignment padding
N_RELA = 40
N_SIGMOID = 2          # first two rows of the decode slab are heatmaps
CH_HEAT = 1            # keypts heatmap row within the slab
CH_OFF = 2             # pts_offset rows 2:4, reg/error rows 4:6
HEAD_ORDER = ("rela", "center", "keypts", "offset", "reg")


# ----------------------------------------------------------------------------
# Fused kernel: in-VMEM im2col + 5 heads + dense decode, one grid step / image
# ----------------------------------------------------------------------------
def make_fused_kernel(H, W, thr, root_thr, eps=1e-4):
    HW = H * W

    def kernel(x_ref, coord_ref, w1_ref, b1_ref, w2_ref, b2_ref,
               rela_ref, dec_ref):
        # ---- in-VMEM im2col: 9 lane rolls (XLU) + boundary masks (VPU) -----
        x = x_ref[0].astype(jnp.float32)               # (Cin, HW)
        xc = coord_ref[0:1, :]                         # x (column) coordinate
        yc = coord_ref[1:2, :]                         # y (row) coordinate
        left_ok = xc > 0.0
        right_ok = xc < float(W - 1)
        up_ok = yc > 0.0
        down_ok = yc < float(H - 1)

        zero = jnp.zeros_like(x)
        taps = []
        # tap index = (dy+1)*3 + (dx+1); w1f columns are tap-major, chan-minor
        # (torch conv1 weights (Cmid,Cin,3,3) import as
        #  w.transpose(0,2,3,1).reshape(Cmid, 9*Cin)).
        for dy, vy in ((-1, up_ok), (0, None), (1, down_ok)):
            for dx, vx in ((-1, left_ok), (0, None), (1, right_ok)):
                off = dy * W + dx
                t = x if off == 0 else pltpu.roll(x, (-off) % HW, axis=1)
                if vx is None:
                    valid = vy
                elif vy is None:
                    valid = vx
                else:
                    valid = jnp.logical_and(vx, vy)
                if valid is not None:                  # zero padding of conv
                    t = jnp.where(valid, t, zero)
                taps.append(t.astype(jnp.bfloat16))
        xT = jnp.concatenate(taps, axis=0)             # (9*Cin, HW) bf16

        # ---- fused heads: conv3x3 (single K=9*Cin matmul) -> ReLU -> 1x1 ----
        mid = jnp.dot(w1_ref[...], xT,
                      preferred_element_type=jnp.float32)      # (Cmid_tot, HW)
        mid = jnp.maximum(mid + b1_ref[...], 0.0)              # bias + ReLU
        out = jnp.dot(w2_ref[...], mid.astype(jnp.bfloat16),
                      preferred_element_type=jnp.float32)      # (48, HW)
        out = out + b2_ref[...]

        # rows 0:40 = rela_offset -> aligned bf16 store (module output)
        rela_ref[0] = out[0:N_RELA, :].astype(jnp.bfloat16)

        # rows 40:48 = decode slab; sigmoid+clamp only on its two heatmap rows
        head8 = out[N_RELA:N_RELA + 8, :]
        row8 = jax.lax.broadcasted_iota(jnp.int32, head8.shape, 0)
        sig8 = jnp.clip(jax.nn.sigmoid(head8), eps, 1.0 - eps)
        head8 = jnp.where(row8 < N_SIGMOID, sig8, head8)

        # ---- dense part of ktdet_decode_fast (host consumes batch 0 only) --
        @pl.when(pl.program_id(0) == 0)
        def _decode():
            heat = head8[CH_HEAT:CH_HEAT + 1, :]                 # kpts hm
            # width-wise (1,3) NMS max-pool via lane rolls + row-edge masks
            left = jnp.where(left_ok, pltpu.roll(heat, 1, axis=1), -jnp.inf)
            right = jnp.where(right_ok, pltpu.roll(heat, HW - 1, axis=1),
                              -jnp.inf)
            hmax = jnp.maximum(heat, jnp.maximum(left, right))
            heat_nms = jnp.where(hmax == heat, heat, 0.0)

            off_y = head8[CH_OFF + 1:CH_OFF + 2, :]              # pts_offset y
            mask_low = jnp.logical_and(off_y < root_thr,
                                       heat_nms > thr).astype(jnp.float32)
            # coord rows 0:4 = (x, y, x, y); slab rows 2:6 = (offx, offy,
            # errx, erry) -> root/align planes in one 4-row add.
            root_align = coord_ref[0:4, :] + head8[CH_OFF:CH_OFF + 4, :]
            # one aligned (8, HW) store; rows 6:8 carry the heatmaps for free.
            dec_ref[0] = jnp.concatenate(
                [heat_nms, mask_low, root_align, head8[0:2, :]], axis=0)

    return kernel


# ----------------------------------------------------------------------------
# Device-side forward (jitted): one fused pallas_call, no HBM-side im2col
# ----------------------------------------------------------------------------
def _make_coord_planes(H, W):
    """Resident (8, H*W) f32 constant: rows (x, y, x, y, 0, 0, 0, 0)."""
    idx = jnp.arange(H * W, dtype=jnp.int32)
    xcol = (idx % W).astype(jnp.float32)
    yrow = (idx // W).astype(jnp.float32)
    zero = jnp.zeros_like(xcol)
    return jnp.stack([xcol, yrow, xcol, yrow, zero, zero, zero, zero], axis=0)


@functools.partial(jax.jit, static_argnames=("thr", "root_thr"))
def _device_forward(x_nchw, w1f, b1f, w2f, b2f, *, thr, root_thr):
    N, Cin, H, W = x_nchw.shape
    HW = H * W
    Cmid_tot = w1f.shape[0]
    Cout_pad = w2f.shape[0]

    x_flat = x_nchw.reshape(N, Cin, HW).astype(jnp.bfloat16)   # half the x read
    coords = _make_coord_planes(H, W)

    kernel = make_fused_kernel(H, W, float(thr), float(root_thr))
    rela_out, dec_out = pl.pallas_call(
        kernel,
        out_shape=(
            jax.ShapeDtypeStruct((N, N_RELA, HW), jnp.bfloat16),   # rela_offset
            jax.ShapeDtypeStruct((N, 8, HW), jnp.float32),         # decode planes
        ),
        grid=(N,),
        in_specs=[
            pl.BlockSpec((1, Cin, HW), lambda n: (n, 0, 0)),
            pl.BlockSpec((8, HW), lambda n: (0, 0)),               # resident
            pl.BlockSpec((Cmid_tot, 9 * Cin), lambda n: (0, 0)),   # resident
            pl.BlockSpec((Cmid_tot, 1), lambda n: (0, 0)),
            pl.BlockSpec((Cout_pad, Cmid_tot), lambda n: (0, 0)),
            pl.BlockSpec((Cout_pad, 1), lambda n: (0, 0)),
        ],
        out_specs=(
            pl.BlockSpec((1, N_RELA, HW), lambda n: (n, 0, 0)),
            pl.BlockSpec((1, 8, HW), lambda n: (n, 0, 0)),
        ),
        compiler_params=pltpu.CompilerParams(
            dimension_semantics=("parallel",)),
    )(x_flat, coords, w1f, b1f, w2f, b2f)

    # channels-first layout -> rela_offset is already NCHW (no transpose).
    # Cast back to f32 for parity with the torch module's output dtype; drop
    # the cast if downstream consumers accept bf16.
    rela_offset = rela_out.reshape(N, N_RELA, H, W).astype(jnp.float32)
    return dec_out, rela_offset


# ----------------------------------------------------------------------------
# Parameter init (deterministic, synthetic) + head fusion
# ----------------------------------------------------------------------------
def init_head_params(key, cin, cmid, cout):
    k1, k2, k3, k4 = jax.random.split(key, 4)
    # w1 rows: output channel; columns ordered (tap, input-channel) = 9*cin.
    w1 = jax.random.normal(k1, (cmid, 9 * cin), jnp.float32) / np.sqrt(9 * cin)
    b1 = jax.random.normal(k2, (cmid,), jnp.float32) * 0.01
    w2 = jax.random.normal(k3, (cout, cmid), jnp.float32) / np.sqrt(cmid)
    b2 = jax.random.normal(k4, (cout,), jnp.float32) * 0.01
    return w1, b1, w2, b2


def init_all_params(key, branch_in_channels, num_hm_classes=1, joint_nums=1):
    cin = cmid = branch_in_channels
    couts = {"rela": 40, "center": num_hm_classes, "keypts": num_hm_classes,
             "offset": joint_nums * 2, "reg": 2}
    keys = jax.random.split(key, len(HEAD_ORDER))
    return {name: init_head_params(k, cin, cmid, couts[name])
            for name, k in zip(HEAD_ORDER, keys)}


def fuse_params(params):
    """Fuse the 5 per-head weights into one conv + one block-diag 1x1 proj."""
    w1s, b1s, w2s, b2s = [], [], [], []
    for name in HEAD_ORDER:                             # rela first (aligned)
        w1, b1, w2, b2 = params[name]
        w1s.append(w1); b1s.append(b1); w2s.append(w2); b2s.append(b2)
    w1f = jnp.concatenate(w1s, axis=0)                  # (Cmid_tot, 9*Cin)
    b1f = jnp.concatenate(b1s, axis=0)[:, None]         # (Cmid_tot, 1)
    w2f = jax.scipy.linalg.block_diag(*w2s)             # (Cout_tot, Cmid_tot)
    b2f = jnp.concatenate(b2s, axis=0)[:, None]         # (Cout_tot, 1)
    # Pad total output channels to a multiple of 8 (sublane-aligned stores).
    pad = (-w2f.shape[0]) % 8
    if pad:
        w2f = jnp.pad(w2f, ((0, pad), (0, 0)))
        b2f = jnp.pad(b2f, ((0, pad), (0, 0)))
    return (w1f.astype(jnp.bfloat16), b1f.astype(jnp.float32),
            w2f.astype(jnp.bfloat16), b2f.astype(jnp.float32))


# ----------------------------------------------------------------------------
# HeadFast.forward (== forward_test fast-decode branch)
# ----------------------------------------------------------------------------
def head_fast_forward(x_nchw, fused_params, root_thr=1.0, kpt_thr=0.4):
    N, Cin, H, W = x_nchw.shape

    dec_out, rela_offset = _device_forward(
        x_nchw, *fused_params, thr=float(kpt_thr), root_thr=float(root_thr))

    # ---- host-side dynamic seed extraction (mirrors .cpu().numpy()) --------
    dec0 = np.asarray(jax.device_get(dec_out[0]))              # one small slab
    heat_nms0 = dec0[0].reshape(H, W)                          # (H, W)
    mask_low0 = dec0[1].reshape(H, W).T                        # (W, H) like torch transpose(1,0)
    root_mat0 = dec0[2:4].reshape(2, H, W).transpose(1, 2, 0)  # (H, W, 2): x, y
    align_mat0 = dec0[4:6].reshape(2, H, W).transpose(1, 2, 0)

    idx = np.where(mask_low0 > 0)
    cpt_seeds = np.array(idx, dtype=int).transpose()

    heat_mat = np.repeat(heat_nms0[..., None], 2, axis=-1)     # (H, W, 2)
    inds = np.where(heat_mat > kpt_thr)
    root_arr = root_mat0[inds].reshape(-1, 2)
    align_arr = align_mat0[inds].reshape(-1, 2)
    kpt_seeds = [(a, np.array(r, dtype=float)) for a, r in zip(align_arr, root_arr)]

    return [cpt_seeds, kpt_seeds, rela_offset]


if __name__ == "__main__":
    key = jax.random.PRNGKey(0)
    kx, kp = jax.random.split(key)

    # Small synthetic shapes: batch=2, branch_in_channels=32, spatial 16x16.
    N, C, H, W = 2, 32, 16, 16
    x = jax.random.normal(kx, (N, C, H, W), jnp.float32)
    params = init_all_params(kp, branch_in_channels=C, num_hm_classes=1,
                             joint_nums=1)
    fused = fuse_params(params)

    cpt_seeds, kpt_seeds, rela_offset = head_fast_forward(
        x, fused, root_thr=1.0, kpt_thr=0.4)
    jax.block_until_ready(rela_offset)

    assert rela_offset.shape == (N, 40, H, W)
    assert cpt_seeds.ndim == 2 and (cpt_seeds.shape[1] == 2 or cpt_seeds.size == 0)
    print("KERNEL_OK")
</pallas_src>

<mosaic_0001>
module attributes {stable_mosaic.version = 11 : i64} {
  func.func @kernel(%arg0: i32, %arg1: memref<1x32x256xbf16, #tpu.memory_space<vmem>>, %arg2: memref<8x256xf32, #tpu.memory_space<vmem>>, %arg3: memref<160x288xbf16, #tpu.memory_space<vmem>>, %arg4: memref<160x1xf32, #tpu.memory_space<vmem>>, %arg5: memref<48x160xbf16, #tpu.memory_space<vmem>>, %arg6: memref<48x1xf32, #tpu.memory_space<vmem>>, %arg7: memref<1x40x256xbf16, #tpu.memory_space<vmem>>, %arg8: memref<1x8x256xf32, #tpu.memory_space<vmem>>) attributes {dimension_semantics = [#tpu.dimension_semantics<parallel>], iteration_bounds = array<i64: 2>, scalar_prefetch = 0 : i64, scratch_operands = 0 : i64, tpu.core_type = #tpu.core_type<tc>, window_params = [{transform_indices = @transform_0, window_bounds = array<i64: 1, 32, 256>}, {pipeline_mode = #tpu.pipeline_mode<synchronous>, transform_indices = @transform_1, window_bounds = array<i64: 8, 256>}, {pipeline_mode = #tpu.pipeline_mode<synchronous>, transform_indices = @transform_2, window_bounds = array<i64: 160, 288>}, {pipeline_mode = #tpu.pipeline_mode<synchronous>, transform_indices = @transform_3, window_bounds = array<i64: 160, 1>}, {pipeline_mode = #tpu.pipeline_mode<synchronous>, transform_indices = @transform_4, window_bounds = array<i64: 48, 160>}, {pipeline_mode = #tpu.pipeline_mode<synchronous>, transform_indices = @transform_5, window_bounds = array<i64: 48, 1>}, {transform_indices = @transform_6, window_bounds = array<i64: 1, 40, 256>}, {transform_indices = @transform_7, window_bounds = array<i64: 1, 8, 256>}]} {
    %c0 = arith.constant 0 : index
    %c0_0 = arith.constant 0 : index
    %c0_1 = arith.constant 0 : index
    %0 = vector.load %arg1[%c0, %c0_0, %c0_1] : memref<1x32x256xbf16, #tpu.memory_space<vmem>>, vector<1x32x256xbf16>
    %1 = vector.shape_cast %0 : vector<1x32x256xbf16> to vector<32x256xbf16>
    %2 = arith.extf %1 : vector<32x256xbf16> to vector<32x256xf32>
    %c0_2 = arith.constant 0 : index
    %c0_3 = arith.constant 0 : index
    %3 = vector.load %arg2[%c0_2, %c0_3] : memref<8x256xf32, #tpu.memory_space<vmem>>, vector<1x256xf32>
    %c1 = arith.constant 1 : index
    %c0_4 = arith.constant 0 : index
    %4 = vector.load %arg2[%c1, %c0_4] : memref<8x256xf32, #tpu.memory_space<vmem>>, vector<1x256xf32>
    %cst = arith.constant 0.000000e+00 : f32
    %5 = vector.broadcast %cst : f32 to vector<1x256xf32>
    %6 = arith.cmpf ogt, %3, %5 : vector<1x256xf32>
    %cst_5 = arith.constant 1.500000e+01 : f32
    %7 = vector.broadcast %cst_5 : f32 to vector<1x256xf32>
    %8 = arith.cmpf olt, %3, %7 : vector<1x256xf32>
    %cst_6 = arith.constant 0.000000e+00 : f32
    %9 = vector.broadcast %cst_6 : f32 to vector<1x256xf32>
    %10 = arith.cmpf ogt, %4, %9 : vector<1x256xf32>
    %cst_7 = arith.constant 1.500000e+01 : f32
    %11 = vector.broadcast %cst_7 : f32 to vector<1x256xf32>
    %12 = arith.cmpf olt, %4, %11 : vector<1x256xf32>
    %cst_8 = arith.constant 0.000000e+00 : f32
    %13 = vector.broadcast %cst_8 : f32 to vector<32x256xf32>
    %c17_i32 = arith.constant 17 : i32
    %14 = tpu.dynamic_rotate %2 by %c17_i32 dim 1 : vector<32x256xf32>, i32 -> vector<32x256xf32>
    %15 = arith.andi %6, %10 : vector<1x256xi1>
    %16 = vector.shape_cast %15 : vector<1x256xi1> to vector<1x256xi1>
    %17 = vector.broadcast %16 : vector<1x256xi1> to vector<32x256xi1>
    %18 = arith.select %17, %14, %13 : vector<32x256xi1>, vector<32x256xf32>
    %19 = arith.truncf %18 : vector<32x256xf32> to vector<32x256xbf16>
    %c16_i32 = arith.constant 16 : i32
    %20 = tpu.dynamic_rotate %2 by %c16_i32 dim 1 : vector<32x256xf32>, i32 -> vector<32x256xf32>
    %21 = vector.shape_cast %10 : vector<1x256xi1> to vector<1x256xi1>
    %22 = vector.broadcast %21 : vector<1x256xi1> to vector<32x256xi1>
    %23 = arith.select %22, %20, %13 : vector<32x256xi1>, vector<32x256xf32>
    %24 = arith.truncf %23 : vector<32x256xf32> to vector<32x256xbf16>
    %c15_i32 = arith.constant 15 : i32
    %25 = tpu.dynamic_rotate %2 by %c15_i32 dim 1 : vector<32x256xf32>, i32 -> vector<32x256xf32>
    %26 = arith.andi %8, %10 : vector<1x256xi1>
    %27 = vector.shape_cast %26 : vector<1x256xi1> to vector<1x256xi1>
    %28 = vector.broadcast %27 : vector<1x256xi1> to vector<32x256xi1>
    %29 = arith.select %28, %25, %13 : vector<32x256xi1>, vector<32x256xf32>
    %30 = arith.truncf %29 : vector<32x256xf32> to vector<32x256xbf16>
    %c1_i32 = arith.constant 1 : i32
    %31 = tpu.dynamic_rotate %2 by %c1_i32 dim 1 : vector<32x256xf32>, i32 -> vector<32x256xf32>
    %32 = vector.shape_cast %6 : vector<1x256xi1> to vector<1x256xi1>
    %33 = vector.broadcast %32 : vector<1x256xi1> to vector<32x256xi1>
    %34 = arith.select %33, %31, %13 : vector<32x256xi1>, vector<32x256xf32>
    %35 = arith.truncf %34 : vector<32x256xf32> to vector<32x256xbf16>
    %36 = arith.truncf %2 : vector<32x256xf32> to vector<32x256xbf16>
    %c255_i32 = arith.constant 255 : i32
    %37 = tpu.dynamic_rotate %2 by %c255_i32 dim 1 : vector<32x256xf32>, i32 -> vector<32x256xf32>
    %38 = vector.shape_cast %8 : vector<1x256xi1> to vector<1x256xi1>
    %39 = vector.broadcast %38 : vector<1x256xi1> to vector<32x256xi1>
    %40 = arith.select %39, %37, %13 : vector<32x256xi1>, vector<32x256xf32>
    %41 = arith.truncf %40 : vector<32x256xf32> to vector<32x256xbf16>
    %c241_i32 = arith.constant 241 : i32
    %42 = tpu.dynamic_rotate %2 by %c241_i32 dim 1 : vector<32x256xf32>, i32 -> vector<32x256xf32>
    %43 = arith.andi %6, %12 : vector<1x256xi1>
    %44 = vector.shape_cast %43 : vector<1x256xi1> to vector<1x256xi1>
    %45 = vector.broadcast %44 : vector<1x256xi1> to vector<32x256xi1>
    %46 = arith.select %45, %42, %13 : vector<32x256xi1>, vector<32x256xf32>
    %47 = arith.truncf %46 : vector<32x256xf32> to vector<32x256xbf16>
    %c240_i32 = arith.constant 240 : i32
    %48 = tpu.dynamic_rotate %2 by %c240_i32 dim 1 : vector<32x256xf32>, i32 -> vector<32x256xf32>
    %49 = vector.shape_cast %12 : vector<1x256xi1> to vector<1x256xi1>
    %50 = vector.broadcast %49 : vector<1x256xi1> to vector<32x256xi1>
    %51 = arith.select %50, %48, %13 : vector<32x256xi1>, vector<32x256xf32>
    %52 = arith.truncf %51 : vector<32x256xf32> to vector<32x256xbf16>
    %c239_i32 = arith.constant 239 : i32
    %53 = tpu.dynamic_rotate %2 by %c239_i32 dim 1 : vector<32x256xf32>, i32 -> vector<32x256xf32>
    %54 = arith.andi %8, %12 : vector<1x256xi1>
    %55 = vector.shape_cast %54 : vector<1x256xi1> to vector<1x256xi1>
    %56 = vector.broadcast %55 : vector<1x256xi1> to vector<32x256xi1>
    %57 = arith.select %56, %53, %13 : vector<32x256xi1>, vector<32x256xf32>
    %58 = arith.truncf %57 : vector<32x256xf32> to vector<32x256xbf16>
    %59 = tpu.concatenate %19, %24, %30, %35, %36, %41, %47, %52, %58 in 0 : vector<32x256xbf16>, vector<32x256xbf16>, vector<32x256xbf16>, vector<32x256xbf16>, vector<32x256xbf16>, vector<32x256xbf16>, vector<32x256xbf16>, vector<32x256xbf16>, vector<32x256xbf16> -> vector<288x256xbf16>
    %c0_9 = arith.constant 0 : index
    %c0_10 = arith.constant 0 : index
    %60 = vector.load %arg3[%c0_9, %c0_10] : memref<160x288xbf16, #tpu.memory_space<vmem>>, vector<160x288xbf16>
    %cst_11 = arith.constant dense<0.000000e+00> : vector<160x256xf32>
    %61 = tpu.matmul %60, %59, %cst_11 {dimension_numbers = #tpu.dot_dimension_numbers<[1], [0], [0], [1], [0, 0, 1, 1], [], []>} : vector<160x288xbf16>, vector<288x256xbf16>, vector<160x256xf32> -> vector<160x256xf32>
    %c0_12 = arith.constant 0 : index
    %c0_13 = arith.constant 0 : index
    %62 = vector.load %arg4[%c0_12, %c0_13] : memref<160x1xf32, #tpu.memory_space<vmem>>, vector<160x1xf32>
    %63 = vector.broadcast %62 : vector<160x1xf32> to vector<160x256xf32>
    %64 = arith.addf %61, %63 : vector<160x256xf32>
    %cst_14 = arith.constant 0.000000e+00 : f32
    %65 = vector.broadcast %cst_14 : f32 to vector<160x256xf32>
    %66 = arith.maximumf %64, %65 : vector<160x256xf32>
    %c0_15 = arith.constant 0 : index
    %c0_16 = arith.constant 0 : index
    %67 = vector.load %arg5[%c0_15, %c0_16] : memref<48x160xbf16, #tpu.memory_space<vmem>>, vector<48x160xbf16>
    %68 = arith.truncf %66 : vector<160x256xf32> to vector<160x256xbf16>
    %cst_17 = arith.constant dense<0.000000e+00> : vector<48x256xf32>
    %69 = tpu.matmul %67, %68, %cst_17 {dimension_numbers = #tpu.dot_dimension_numbers<[1], [0], [0], [1], [0, 0, 1, 1], [], []>} : vector<48x160xbf16>, vector<160x256xbf16>, vector<48x256xf32> -> vector<48x256xf32>
    %c0_18 = arith.constant 0 : index
    %c0_19 = arith.constant 0 : index
    %70 = vector.load %arg6[%c0_18, %c0_19] : memref<48x1xf32, #tpu.memory_space<vmem>>, vector<48x1xf32>
    %71 = vector.broadcast %70 : vector<48x1xf32> to vector<48x256xf32>
    %72 = arith.addf %69, %71 : vector<48x256xf32>
    %73 = vector.extract_strided_slice %72 {offsets = [0, 0], sizes = [40, 256], strides = [1, 1]} : vector<48x256xf32> to vector<40x256xf32>
    %74 = arith.truncf %73 : vector<40x256xf32> to vector<40x256xbf16>
    %c0_20 = arith.constant 0 : index
    %c0_21 = arith.constant 0 : index
    %c0_22 = arith.constant 0 : index
    %75 = vector.load %arg7[%c0_20, %c0_21, %c0_22] : memref<1x40x256xbf16, #tpu.memory_space<vmem>>, vector<1x40x256xbf16>
    %76 = vector.shape_cast %75 : vector<1x40x256xbf16> to vector<40x256xbf16>
    %77 = vector.shape_cast %74 : vector<40x256xbf16> to vector<1x40x256xbf16>
    tpu.vector_store %arg7[%c0_20, %c0_21, %c0_22], %77 {strides = array<i32>} : memref<1x40x256xbf16, #tpu.memory_space<vmem>>, vector<1x40x256xbf16>,
    %78 = vector.extract_strided_slice %72 {offsets = [40, 0], sizes = [8, 256], strides = [1, 1]} : vector<48x256xf32> to vector<8x256xf32>
    %79 = tpu.iota {dimensions = array<i32: 0>} : vector<8x256xi32>
    %80 = arith.negf %78 : vector<8x256xf32>
    %81 = math.exp %80 : vector<8x256xf32>
    %cst_23 = arith.constant 1.000000e+00 : f32
    %82 = vector.broadcast %cst_23 : f32 to vector<8x256xf32>
    %83 = arith.addf %82, %81 : vector<8x256xf32>
    %84 = arith.divf %82, %83 : vector<8x256xf32>
    %cst_24 = arith.constant 9.99999974E-5 : f32
    %cst_25 = arith.constant 0.999899983 : f32
    %85 = vector.broadcast %cst_24 : f32 to vector<8x256xf32>
    %86 = arith.maximumf %85, %84 : vector<8x256xf32>
    %87 = vector.broadcast %cst_25 : f32 to vector<8x256xf32>
    %88 = arith.minimumf %87, %86 : vector<8x256xf32>
    %c2_i32 = arith.constant 2 : i32
    %89 = vector.broadcast %c2_i32 : i32 to vector<8x256xi32>
    %90 = arith.cmpi slt, %79, %89 : vector<8x256xi32>
    %91 = arith.select %90, %88, %78 : vector<8x256xi1>, vector<8x256xf32>
    %c0_i32 = arith.constant 0 : i32
    %92 = arith.cmpi eq, %arg0, %c0_i32 : i32
    %93 = arith.extui %92 : i1 to i32
    %c0_i32_26 = arith.constant 0 : i32
    %94 = arith.cmpi ne, %93, %c0_i32_26 : i32
    scf.if %94 {
      %95 = vector.extract_strided_slice %91 {offsets = [1, 0], sizes = [1, 256], strides = [1, 1]} : vector<8x256xf32> to vector<1x256xf32>
      %c1_i32_27 = arith.constant 1 : i32
      %96 = tpu.dynamic_rotate %95 by %c1_i32_27 dim 1 : vector<1x256xf32>, i32 -> vector<1x256xf32>
      %cst_28 = arith.constant 0xFF800000 : f32
      %97 = vector.broadcast %cst_28 : f32 to vector<1x256xf32>
      %98 = arith.select %6, %96, %97 : vector<1x256xi1>, vector<1x256xf32>
      %c255_i32_29 = arith.constant 255 : i32
      %99 = tpu.dynamic_rotate %95 by %c255_i32_29 dim 1 : vector<1x256xf32>, i32 -> vector<1x256xf32>
      %cst_30 = arith.constant 0xFF800000 : f32
      %100 = vector.broadcast %cst_30 : f32 to vector<1x256xf32>
      %101 = arith.select %8, %99, %100 : vector<1x256xi1>, vector<1x256xf32>
      %102 = arith.maximumf %98, %101 : vector<1x256xf32>
      %103 = arith.maximumf %95, %102 : vector<1x256xf32>
      %104 = arith.cmpf oeq, %103, %95 : vector<1x256xf32>
      %cst_31 = arith.constant 0.000000e+00 : f32
      %105 = vector.broadcast %cst_31 : f32 to vector<1x256xf32>
      %106 = arith.select %104, %95, %105 : vector<1x256xi1>, vector<1x256xf32>
      %107 = vector.extract_strided_slice %91 {offsets = [3, 0], sizes = [1, 256], strides = [1, 1]} : vector<8x256xf32> to vector<1x256xf32>
      %cst_32 = arith.constant 1.000000e+00 : f32
      %108 = vector.broadcast %cst_32 : f32 to vector<1x256xf32>
      %109 = arith.cmpf olt, %107, %108 : vector<1x256xf32>
      %cst_33 = arith.constant 4.000000e-01 : f32
      %110 = vector.broadcast %cst_33 : f32 to vector<1x256xf32>
      %111 = arith.cmpf ogt, %106, %110 : vector<1x256xf32>
      %112 = arith.andi %109, %111 : vector<1x256xi1>
      %113 = arith.extui %112 : vector<1x256xi1> to vector<1x256xi32>
      %114 = arith.sitofp %113 : vector<1x256xi32> to vector<1x256xf32>
      %c0_34 = arith.constant 0 : index
      %c0_35 = arith.constant 0 : index
      %115 = vector.load %arg2[%c0_34, %c0_35] : memref<8x256xf32, #tpu.memory_space<vmem>>, vector<4x256xf32>
      %116 = vector.extract_strided_slice %91 {offsets = [2, 0], sizes = [4, 256], strides = [1, 1]} : vector<8x256xf32> to vector<4x256xf32>
      %117 = arith.addf %115, %116 : vector<4x256xf32>
      %118 = vector.extract_strided_slice %91 {offsets = [0, 0], sizes = [2, 256], strides = [1, 1]} : vector<8x256xf32> to vector<2x256xf32>
      %119 = tpu.concatenate %106, %114, %117, %118 in 0 : vector<1x256xf32>, vector<1x256xf32>, vector<4x256xf32>, vector<2x256xf32> -> vector<8x256xf32>
      %c0_36 = arith.constant 0 : index
      %c0_37 = arith.constant 0 : index
      %c0_38 = arith.constant 0 : index
      %120 = vector.load %arg8[%c0_36, %c0_37, %c0_38] : memref<1x8x256xf32, #tpu.memory_space<vmem>>, vector<1x8x256xf32>
      %121 = vector.shape_cast %120 : vector<1x8x256xf32> to vector<8x256xf32>
      %122 = vector.shape_cast %119 : vector<8x256xf32> to vector<1x8x256xf32>
      tpu.vector_store %arg8[%c0_36, %c0_37, %c0_38], %122 {strides = array<i32>} : memref<1x8x256xf32, #tpu.memory_space<vmem>>, vector<1x8x256xf32>,
    } else {
    }
    return
  }
  func.func @transform_0(%arg0: i32) -> (i32, i32, i32) {
    %c0_i32 = arith.constant 0 : i32
    %c0_i32_0 = arith.constant 0 : i32
    %c0_i32_1 = arith.constant 0 : i32
    return %arg0, %c0_i32, %c0_i32_0 : i32, i32, i32
  }
  func.func @transform_1(%arg0: i32) -> (i32, i32) {
    %c0_i32 = arith.constant 0 : i32
    %c0_i32_0 = arith.constant 0 : i32
    %c0_i32_1 = arith.constant 0 : i32
    return %c0_i32, %c0_i32_0 : i32, i32
  }
  func.func @transform_2(%arg0: i32) -> (i32, i32) {
    %c0_i32 = arith.constant 0 : i32
    %c0_i32_0 = arith.constant 0 : i32
    %c0_i32_1 = arith.constant 0 : i32
    return %c0_i32, %c0_i32_0 : i32, i32
  }
  func.func @transform_3(%arg0: i32) -> (i32, i32) {
    %c0_i32 = arith.constant 0 : i32
    %c0_i32_0 = arith.constant 0 : i32
    %c0_i32_1 = arith.constant 0 : i32
    return %c0_i32, %c0_i32_0 : i32, i32
  }
  func.func @transform_4(%arg0: i32) -> (i32, i32) {
    %c0_i32 = arith.constant 0 : i32
    %c0_i32_0 = arith.constant 0 : i32
    %c0_i32_1 = arith.constant 0 : i32
    return %c0_i32, %c0_i32_0 : i32, i32
  }
  func.func @transform_5(%arg0: i32) -> (i32, i32) {
    %c0_i32 = arith.constant 0 : i32
    %c0_i32_0 = arith.constant 0 : i32
    %c0_i32_1 = arith.constant 0 : i32
    return %c0_i32, %c0_i32_0 : i32, i32
  }
  func.func @transform_6(%arg0: i32) -> (i32, i32, i32) {
    %c0_i32 = arith.constant 0 : i32
    %c0_i32_0 = arith.constant 0 : i32
    %c0_i32_1 = arith.constant 0 : i32
    return %arg0, %c0_i32, %c0_i32_0 : i32, i32, i32
  }
  func.func @transform_7(%arg0: i32) -> (i32, i32, i32) {
    %c0_i32 = arith.constant 0 : i32
    %c0_i32_0 = arith.constant 0 : i32
    %c0_i32_1 = arith.constant 0 : i32
    return %arg0, %c0_i32, %c0_i32_0 : i32, i32, i32
  }
}

</mosaic_0001>

<llo_original>
// kernel: _device_forward.1
$region0: #{_device_forward.1}
  #allocation0 [shape = 'u32[]', space=smem, size = 0x4, offset = 0x4, fixed_abs, tag = 'smem constant byte address 0x4 - core index']
  #allocation1 [shape = 'u32[144,128]{1,0:T(1,128)}', space=vmem, size = 0x12000, scoped, tag = 'internal scratch']
  %s0 = inlined_call_operand.vmem [shape: bf16[2,32,256], index: 0, kind: input, shape index: {}]
  %s1 = inlined_call_operand.vmem [shape: f32[8,256], index: 1, kind: input, shape index: {}]
  %s2 = inlined_call_operand.vmem [shape: bf16[160,288], index: 2, kind: input, shape index: {}]
  %s3 = inlined_call_operand.vmem [shape: f32[160,1], index: 3, kind: input, shape index: {}]
  %s4 = inlined_call_operand.vmem [shape: bf16[48,160], index: 4, kind: input, shape index: {}]
  %s5 = inlined_call_operand.vmem [shape: f32[48,1], index: 5, kind: input, shape index: {}]
  %s6 = inlined_call_operand.vmem [shape: bf16[2,40,256], index: 6, kind: output, shape index: {0}]
  %s7 = inlined_call_operand.hbm [shape: f32[2,8,256], index: 7, kind: output, shape index: {1}]
  %8 = xla_tuple %s6, %s7
  %s9 = sld [smem:[#allocation0]]
  $region69: #{_device_forward.1} parent=0
    _
  %s11 = ssub.s32 1, %s9
  %s12 = scalar_select 0, %s11, %s9
  $region1: #{_device_forward.1} parent=0
    #allocation2 [shape = 'u8[16384]{0}', space=vmem, size = 0x4000, scoped, tag = 'output window, operand 1']
    #allocation3 [shape = 's32[2]{0}', space=sflag, size = 0x8, scoped, tag = 'scoped memory for _device_forward.1']
    %13 = vsyncpa [#allocation3], 0
    %s14 = scalar_lea.sflag [#allocation3], 1
    %15 = vsyncpa %s14, 0
    loop: start=0, step=1, limit=4
    $region2: #{_device_forward.1} parent=1 // loop_pre_header
      _
    $region3: #{_device_forward.1} parent=1 // loop_header
      %s17 = sphi 0, %s21
      %p18 = scmp.ge.s32.totalorder %s17, 4
      %s27 = sphi 0, %s29
      %s30 = sphi 0, %s27
      %s31 = sphi 0, %s30
      %s47 = sphi 0, %s31
      %s51 = sphi 0, %s51
      %s53 = sphi 0, %s51
      %s54 = sphi 0, %s53
      %s68 = sphi 0, %s54
      %s72 = sphi 0, %s72
      %s74 = sphi 0, %s72
      %s75 = sphi 0, %s74
      %s89 = sphi 0, %s75
      %s93 = sphi 0, %s93
      %s95 = sphi 0, %s93
      %s96 = sphi 0, %s95
      %s110 = sphi 0, %s96
      %s114 = sphi 0, %s114
      %s116 = sphi 0, %s114
      %s117 = sphi 0, %s116
      %s131 = sphi 0, %s117
      %s135 = sphi 0, %s135
      %s137 = sphi 0, %s135
      %s138 = sphi 0, %s137
      %s152 = sphi 0, %s138
      %s158 = sphi 0, %s160
      %s161 = sphi 0, %s158
      %s162 = sphi 0, %s161
      %s178 = sphi 0, %s162
      %s184 = sphi 0, %s186
      %s187 = sphi 0, %s184
      %s188 = sphi 0, %s187
      %s204 = sphi 0, %s188
    $region4: #{_device_forward.1} parent=1 // loop_header_branch
      %20 = sbr.rel (%p18) target = $region8
    $region5: #{_device_forward.1} parent=1 // loop_body
      %s22 = ssub.s32 %s17, 1
      %s23 = ssub.s32 %s17, 2
      %s24 = sadd.s32 %s17, 1
      %s25 = ssub.s32 %s17, %s24
      %p26 = scmp.eq.s32.totalorder %s25, 0
      %s28 = sadd.s32 %s27, 1
      %s29 = scalar_select %p26, %s27, %s28
      %p32 = pneg %p26
      %p33 = scmp.eq.s32.totalorder %s17, 1
      %p34 = por %p32, %p33
      %p35 = scmp.ne.s32.totalorder %s27, %s30
      %p36 = scmp.eq.s32.totalorder %s17, 0
      %p37 = por %p35, %p36
      %p38 = scmp.ne.s32.totalorder %s27, %s30
      %p39 = scmp.eq.s32.totalorder %s22, 1
      %p40 = por %p38, %p39
      %p41 = scmp.ne.s32.totalorder %s30, %s31
      %p42 = scmp.eq.s32.totalorder %s22, 0
      %p43 = por %p41, %p42
      %p44 = scmp.ne.s32.totalorder %s30, %s31
      %p45 = scmp.eq.s32.totalorder %s23, 1
      %p46 = por %p44, %p45
      %p48 = scmp.ne.s32.totalorder %s31, %s47
      %p49 = scmp.eq.s32.totalorder %s23, 0
      %p50 = por %p48, %p49
      %s52 = sadd.s32 %s51, 1
      %p55 = scmp.eq.s32.totalorder %s17, 1
      %p56 = scmp.ne.s32.totalorder %s51, %s53
      %p57 = scmp.eq.s32.totalorder %s17, 0
      %p58 = por %p56, %p57
      %p59 = scmp.ne.s32.totalorder %s51, %s53
      %p60 = scmp.eq.s32.totalorder %s22, 1
      %p61 = por %p59, %p60
      %p62 = scmp.ne.s32.totalorder %s53, %s54
      %p63 = scmp.eq.s32.totalorder %s22, 0
      %p64 = por %p62, %p63
      %p65 = scmp.ne.s32.totalorder %s53, %s54
      %p66 = scmp.eq.s32.totalorder %s23, 1
      %p67 = por %p65, %p66
      %p69 = scmp.ne.s32.totalorder %s54, %s68
      %p70 = scmp.eq.s32.totalorder %s23, 0
      %p71 = por %p69, %p70
      %s73 = sadd.s32 %s72, 1
      %p76 = scmp.eq.s32.totalorder %s17, 1
      %p77 = scmp.ne.s32.totalorder %s72, %s74
      %p78 = scmp.eq.s32.totalorder %s17, 0
      %p79 = por %p77, %p78
      %p80 = scmp.ne.s32.totalorder %s72, %s74
      %p81 = scmp.eq.s32.totalorder %s22, 1
      %p82 = por %p80, %p81
      %p83 = scmp.ne.s32.totalorder %s74, %s75
      %p84 = scmp.eq.s32.totalorder %s22, 0
      %p85 = por %p83, %p84
      %p86 = scmp.ne.s32.totalorder %s74, %s75
      %p87 = scmp.eq.s32.totalorder %s23, 1
      %p88 = por %p86, %p87
      %p90 = scmp.ne.s32.totalorder %s75, %s89
      %p91 = scmp.eq.s32.totalorder %s23, 0
      %p92 = por %p90, %p91
      %s94 = sadd.s32 %s93, 1
      %p97 = scmp.eq.s32.totalorder %s17, 1
      %p98 = scmp.ne.s32.totalorder %s93, %s95
      %p99 = scmp.eq.s32.totalorder %s17, 0
      %p100 = por %p98, %p99
      %p101 = scmp.ne.s32.totalorder %s93, %s95
      %p102 = scmp.eq.s32.totalorder %s22, 1
      %p103 = por %p101, %p102
      %p104 = scmp.ne.s32.totalorder %s95, %s96
      %p105 = scmp.eq.s32.totalorder %s22, 0
      %p106 = por %p104, %p105
      %p107 = scmp.ne.s32.totalorder %s95, %s96
      %p108 = scmp.eq.s32.totalorder %s23, 1
      %p109 = por %p107, %p108
      %p111 = scmp.ne.s32.totalorder %s96, %s110
      %p112 = scmp.eq.s32.totalorder %s23, 0
      %p113 = por %p111, %p112
      %s115 = sadd.s32 %s114, 1
      %p118 = scmp.eq.s32.totalorder %s17, 1
      %p119 = scmp.ne.s32.totalorder %s114, %s116
      %p120 = scmp.eq.s32.totalorder %s17, 0
      %p121 = por %p119, %p120
      %p122 = scmp.ne.s32.totalorder %s114, %s116
      %p123 = scmp.eq.s32.totalorder %s22, 1
      %p124 = por %p122, %p123
      %p125 = scmp.ne.s32.totalorder %s116, %s117
      %p126 = scmp.eq.s32.totalorder %s22, 0
      %p127 = por %p125, %p126
      %p128 = scmp.ne.s32.totalorder %s116, %s117
      %p129 = scmp.eq.s32.totalorder %s23, 1
      %p130 = por %p128, %p129
      %p132 = scmp.ne.s32.totalorder %s117, %s131
      %p133 = scmp.eq.s32.totalorder %s23, 0
      %p134 = por %p132, %p133
      %s136 = sadd.s32 %s135, 1
      %p139 = scmp.eq.s32.totalorder %s17, 1
      %p140 = scmp.ne.s32.totalorder %s135, %s137
      %p141 = scmp.eq.s32.totalorder %s17, 0
      %p142 = por %p140, %p141
      %p143 = scmp.ne.s32.totalorder %s135, %s137
      %p144 = scmp.eq.s32.totalorder %s22, 1
      %p145 = por %p143, %p144
      %p146 = scmp.ne.s32.totalorder %s137, %s138
      %p147 = scmp.eq.s32.totalorder %s22, 0
      %p148 = por %p146, %p147
      %p149 = scmp.ne.s32.totalorder %s137, %s138
      %p150 = scmp.eq.s32.totalorder %s23, 1
      %p151 = por %p149, %p150
      %p153 = scmp.ne.s32.totalorder %s138, %s152
      %p154 = scmp.eq.s32.totalorder %s23, 0
      %p155 = por %p153, %p154
      %s156 = ssub.s32 %s17, %s24
      %p157 = scmp.eq.s32.totalorder %s156, 0
      %s159 = sadd.s32 %s158, 1
      %s160 = scalar_select %p157, %s158, %s159
      %p163 = pneg %p157
      %p164 = scmp.eq.s32.totalorder %s17, 1
      %p165 = por %p163, %p164
      %p166 = scmp.ne.s32.totalorder %s158, %s161
      %p167 = scmp.eq.s32.totalorder %s17, 0
      %p168 = por %p166, %p167
      %p169 = scmp.ne.s32.totalorder %s158, %s161
      %p170 = scmp.eq.s32.totalorder %s22, 1
      %p171 = por %p169, %p170
      %p172 = scmp.ne.s32.totalorder %s161, %s162
      %p173 = scmp.eq.s32.totalorder %s22, 0
      %p174 = por %p172, %p173
      %p175 = scmp.ne.s32.totalorder %s161, %s162
      %p176 = scmp.eq.s32.totalorder %s23, 1
      %p177 = por %p175, %p176
      %p179 = scmp.ne.s32.totalorder %s162, %s178
      %p180 = scmp.eq.s32.totalorder %s23, 0
      %p181 = por %p179, %p180
      %s182 = ssub.s32 %s17, %s24
      %p183 = scmp.eq.s32.totalorder %s182, 0
      %s185 = sadd.s32 %s184, 1
      %s186 = scalar_select %p183, %s184, %s185
      %p189 = pneg %p183
      %p190 = scmp.eq.s32.totalorder %s17, 1
      %p191 = por %p189, %p190
      %p192 = scmp.ne.s32.totalorder %s184, %s187
      %p193 = scmp.eq.s32.totalorder %s17, 0
      %p194 = por %p192, %p193
      %p195 = scmp.ne.s32.totalorder %s184, %s187
      %p196 = scmp.eq.s32.totalorder %s22, 1
      %p197 = por %p195, %p196
      %p198 = scmp.ne.s32.totalorder %s187, %s188
      %p199 = scmp.eq.s32.totalorder %s22, 0
      %p200 = por %p198, %p199
      %p201 = scmp.ne.s32.totalorder %s187, %s188
      %p202 = scmp.eq.s32.totalorder %s23, 1
      %p203 = por %p201, %p202
      %p205 = scmp.ne.s32.totalorder %s188, %s204
      %p206 = scmp.eq.s32.totalorder %s23, 0
      %p207 = por %p205, %p206
      %p208 = scmp.le.s32.totalorder 1, %s17
      %p209 = scmp.lt.s32.totalorder %s17, 3
      %p210 = pnand %p208, %p209
      %p211 = pneg %p210
      // Predicated region
      $region9: #{_device_forward.1} parent=5 // pred_check
        _
      $region10: #{_device_forward.1} parent=5 // pred_check_branch
        %213 = sbr.rel (%p210) target = $region12
      $region11: #{_device_forward.1} parent=5 // pred_region
        %s214 = ssub.s32 %s17, 1
        // Predicated region
        $region13: #{_device_forward.1} parent=11 // pred_check
          %p215 = pneg %p64
        $region14: #{_device_forward.1} parent=11 // pred_check_branch
          %217 = sbr.rel (%p215) target = $region16
        $region15: #{_device_forward.1} parent=11 // pred_region
          _
        $region16: #{_device_forward.1} parent=11 // pred_fallthru
          _
        // Predicated region
        $region17: #{_device_forward.1} parent=11 // pred_check
          %p218 = pneg %p85
        $region18: #{_device_forward.1} parent=11 // pred_check_branch
          %220 = sbr.rel (%p218) target = $region20
        $region19: #{_device_forward.1} parent=11 // pred_region
          _
        $region20: #{_device_forward.1} parent=11 // pred_fallthru
          _
        // Predicated region
        $region21: #{_device_forward.1} parent=11 // pred_check
          %p221 = pneg %p106
        $region22: #{_device_forward.1} parent=11 // pred_check_branch
          %223 = sbr.rel (%p221) target = $region24
        $region23: #{_device_forward.1} parent=11 // pred_region
          _
        $region24: #{_device_forward.1} parent=11 // pred_fallthru
          _
        // Predicated region
        $region25: #{_device_forward.1} parent=11 // pred_check
          %p224 = pneg %p127
        $region26: #{_device_forward.1} parent=11 // pred_check_branch
          %226 = sbr.rel (%p224) target = $region28
        $region27: #{_device_forward.1} parent=11 // pred_region
          _
        $region28: #{_device_forward.1} parent=11 // pred_fallthru
          _
        // Predicated region
        $region29: #{_device_forward.1} parent=11 // pred_check
          %p227 = pneg %p148
        $region30: #{_device_forward.1} parent=11 // pred_check_branch
          %229 = sbr.rel (%p227) target = $region32
        $region31: #{_device_forward.1} parent=11 // pred_region
          _
        $region32: #{_device_forward.1} parent=11 // pred_fallthru
          _
      $region12: #{_device_forward.1} parent=5 // pred_fallthru
        _
      %p230 = scmp.lt.s32.totalorder %s17, 2
      // Predicated region
      $region33: #{_device_forward.1} parent=5 // pred_check
        %p231 = pneg %p230
      $region34: #{_device_forward.1} parent=5 // pred_check_branch
        %233 = sbr.rel (%p231) target = $region36
      $region35: #{_device_forward.1} parent=5 // pred_region
        // Predicated region
        $region37: #{_device_forward.1} parent=35 // pred_check
          %p234 = pneg %p37
        $region38: #{_device_forward.1} parent=35 // pred_check_branch
          %236 = sbr.rel (%p234) target = $region40
        $region39: #{_device_forward.1} parent=35 // pred_region
          %p237 = scmp.lt.s32.totalorder %s17, 1
          %s238 = scalar_select %p237, %s17, 1
          %s239 = smul.addr %s238, 8
          %s240 = smul.addr %s239, 4
          %s241 = scalar_lea.vmem %s0, %s240
        $region40: #{_device_forward.1} parent=35 // pred_fallthru
          _
      $region36: #{_device_forward.1} parent=5 // pred_fallthru
        _
      %p242 = scmp.le.s32.totalorder 1, %s17
      %p243 = scmp.lt.s32.totalorder %s17, 3
      %p244 = pnand %p242, %p243
      %p245 = pneg %p244
      // Predicated region
      $region41: #{_device_forward.1} parent=5 // pred_check
        _
      $region42: #{_device_forward.1} parent=5 // pred_check_branch
        %247 = sbr.rel (%p244) target = $region44
      $region43: #{_device_forward.1} parent=5 // pred_region
        %s248 = ssub.s32 %s17, 1
        %p249 = scmp.lt.s32.totalorder %s22, 1
        %s250 = scalar_select %p249, %s22, 1
        %s251 = smul.addr %s250, 8
        %s252 = smul.addr %s251, 4
        %s253 = scalar_lea.vmem %s0, %s252
        %p254 = pneg %p43
        %p255 = pneg %p40
        %p256 = pneg %p64
        %p257 = pneg %p61
        %p258 = pneg %p85
        %p259 = pneg %p82
        %p260 = pneg %p106
        %p261 = pneg %p103
        %p262 = pneg %p127
        %p263 = pneg %p124
        %p264 = pneg %p148
        %p265 = pneg %p145
        %p266 = pneg %p174
        %p267 = pneg %p171
        %p268 = scmp.lt.s32.totalorder %s22, 1
        %s269 = scalar_select %p268, %s22, 1
        %s270 = smul.addr %s269, 10
        %s271 = smul.addr %s270, 4
        %s272 = scalar_lea.vmem %s6, %s271
        %p273 = pneg %p200
        %p274 = pneg %p197
        %s275 = sand.u32 %s187, 1
        %s276 = scalar_lea.sflag [#allocation3], %s275
        %s277 = sand.u32 %s187, 1
        %s278 = smul.addr %s277, 16
        %s279 = scalar_lea.vmem [#allocation2], %s278
        %p280 = scmp.lt.s32.totalorder %s22, 1
        %s281 = scalar_select %p280, %s22, 1
        %s282 = smul.addr %s281, 8
        %s283 = smul.addr %s282, 4
        %s284 = scalar_lea.vmem %s0, %s283
        %p285 = scmp.lt.s32.totalorder %s22, 1
        %s286 = scalar_select %p285, %s22, 1
        %s287 = smul.addr %s286, 10
        %s288 = smul.addr %s287, 4
        %s289 = scalar_lea.vmem %s6, %s288
        %v291 = vld [vmem:[%s284] sm:$0xff]
        %v292 = vld [vmem:[%s284 + $0x8] sm:$0xff]
        %v293 = vld [vmem:[%s284 + $0x10] sm:$0xff]
        %v294 = vld [vmem:[%s284 + $0x18] sm:$0xff]
        %v295 = vunpack.c.l.bf16 %v291
        %v296 = vunpack.c.h.bf16 %v291
        %v297 = vunpack.c.l.bf16 %v292
        %v298 = vunpack.c.h.bf16 %v292
        %v299 = vunpack.c.l.bf16 %v293
        %v300 = vunpack.c.h.bf16 %v293
        %v301 = vunpack.c.l.bf16 %v294
        %v302 = vunpack.c.h.bf16 %v294
        %v303 = vld [vmem:[%s1] ss:$8 sm:$0x3]
        %s304 = scalar_lea.vmem %s1, 1
        %v305 = vld [vmem:[%s304] ss:$8 sm:$0x3]
        %vm306 = vcmp.gt.f32.partialorder %v303, 0.0
        %vm307 = vcmp.lt.f32.partialorder %v303, 15.0
        %vm308 = vcmp.gt.f32.partialorder %v305, 0.0
        %vm309 = vcmp.lt.f32.partialorder %v305, 15.0
        %310 = vrot.lane.b32.xlu0 %v295, 17
        %v311 = vpop.permute.xlu0 %310
        %312 = vrot.lane.b32.xlu0 %v297, 17
        %v313 = vpop.permute.xlu0 %312
        %314 = vrot.lane.b32.xlu0 %v299, 17
        %v315 = vpop.permute.xlu0 %314
        %316 = vrot.lane.b32.xlu0 %v301, 17
        %v317 = vpop.permute.xlu0 %316
        %318 = vrot.lane.b32.xlu0 %v296, 17
        %v319 = vpop.permute.xlu0 %318
        %320 = vrot.lane.b32.xlu0 %v298, 17
        %v321 = vpop.permute.xlu0 %320
        %322 = vrot.lane.b32.xlu0 %v300, 17
        %v323 = vpop.permute.xlu0 %322
        %324 = vrot.lane.b32.xlu0 %v302, 17
        %v325 = vpop.permute.xlu0 %324
        %v326 = vlaneseq
        %v327 = vand.u32 %v326, 127
        %vm328 = vcmp.lt.s32.totalorder %v327, 17
        %v329 = vsel %vm328, %v311, %v319
        %v330 = vsel %vm328, %v313, %v321
        %v331 = vsel %vm328, %v315, %v323
        %v332 = vsel %vm328, %v317, %v325
        %v333 = vsel %vm328, %v319, %v311
        %v334 = vsel %vm328, %v321, %v313
        %v335 = vsel %vm328, %v323, %v315
        %v336 = vsel %vm328, %v325, %v317
        %vm337 = vmand %vm306, %vm308
        %v338 = vsel %vm337, 1, 0
        %v339 = vlaneseq
        %v340 = vshrl.u32 %v339, 7
        %v341 = vsub.s32 0, %v340
        %v342 = vrot.slane %v338, %v341
        %v343 = vlaneseq
        %v344 = vshrl.u32 %v343, 7
        %v345 = vsub.s32 1, %v344
        %v346 = vrot.slane %v338, %v345
        %vm347 = vcmp.eq.s32.totalorder %v342, 1
        %vm348 = vcmp.eq.s32.totalorder %v346, 1
        %v349 = vsel %vm347, %v333, 0.0
        %v350 = vsel %vm348, %v329, 0.0
        %v351 = vsel %vm347, %v334, 0.0
        %v352 = vsel %vm348, %v330, 0.0
        %v353 = vsel %vm347, %v335, 0.0
        %v354 = vsel %vm348, %v331, 0.0
        %v355 = vsel %vm347, %v336, 0.0
        %v356 = vsel %vm348, %v332, 0.0
        %v357 = vpack.c.bf16 %v351, %v349
        %v358 = vpack.c.bf16 %v352, %v350
        %v359 = vpack.c.bf16 %v355, %v353
        %v360 = vpack.c.bf16 %v356, %v354
        %361 = vrot.lane.b32.xlu0 %v295, 16
        %v362 = vpop.permute.xlu0 %361
        %363 = vrot.lane.b32.xlu0 %v297, 16
        %v364 = vpop.permute.xlu0 %363
        %365 = vrot.lane.b32.xlu0 %v299, 16
        %v366 = vpop.permute.xlu0 %365
        %367 = vrot.lane.b32.xlu0 %v301, 16
        %v368 = vpop.permute.xlu0 %367
        %369 = vrot.lane.b32.xlu0 %v296, 16
        %v370 = vpop.permute.xlu0 %369
        %371 = vrot.lane.b32.xlu0 %v298, 16
        %v372 = vpop.permute.xlu0 %371
        %373 = vrot.lane.b32.xlu0 %v300, 16
        %v374 = vpop.permute.xlu0 %373
        %375 = vrot.lane.b32.xlu0 %v302, 16
        %v376 = vpop.permute.xlu0 %375
        %vm377 = vcmp.lt.s32.totalorder %v327, 16
        %v378 = vsel %vm377, %v362, %v370
        %v379 = vsel %vm377, %v364, %v372
        %v380 = vsel %vm377, %v366, %v374
        %v381 = vsel %vm377, %v368, %v376
        %v382 = vsel %vm377, %v370, %v362
        %v383 = vsel %vm377, %v372, %v364
        %v384 = vsel %vm377, %v374, %v366
        %v385 = vsel %vm377, %v376, %v368
        %v386 = vsel %vm308, 1, 0
        %v387 = vlaneseq
        %v388 = vshrl.u32 %v387, 7
        %v389 = vsub.s32 0, %v388
        %v390 = vrot.slane %v386, %v389
        %v391 = vlaneseq
        %v392 = vshrl.u32 %v391, 7
        %v393 = vsub.s32 1, %v392
        %v394 = vrot.slane %v386, %v393
        %vm395 = vcmp.eq.s32.totalorder %v390, 1
        %vm396 = vcmp.eq.s32.totalorder %v394, 1
        %v397 = vsel %vm395, %v382, 0.0
        %v398 = vsel %vm396, %v378, 0.0
        %v399 = vsel %vm395, %v383, 0.0
        %v400 = vsel %vm396, %v379, 0.0
        %v401 = vsel %vm395, %v384, 0.0
        %v402 = vsel %vm396, %v380, 0.0
        %v403 = vsel %vm395, %v385, 0.0
        %v404 = vsel %vm396, %v381, 0.0
        %v405 = vpack.c.bf16 %v399, %v397
        %v406 = vpack.c.bf16 %v400, %v398
        %v407 = vpack.c.bf16 %v403, %v401
        %v408 = vpack.c.bf16 %v404, %v402
        %409 = vrot.lane.b32.xlu0 %v295, 15
        %v410 = vpop.permute.xlu0 %409
        %411 = vrot.lane.b32.xlu0 %v297, 15
        %v412 = vpop.permute.xlu0 %411
        %413 = vrot.lane.b32.xlu0 %v299, 15
        %v414 = vpop.permute.xlu0 %413
        %415 = vrot.lane.b32.xlu0 %v301, 15
        %v416 = vpop.permute.xlu0 %415
        %417 = vrot.lane.b32.xlu0 %v296, 15
        %v418 = vpop.permute.xlu0 %417
        %419 = vrot.lane.b32.xlu0 %v298, 15
        %v420 = vpop.permute.xlu0 %419
        %421 = vrot.lane.b32.xlu0 %v300, 15
        %v422 = vpop.permute.xlu0 %421
        %423 = vrot.lane.b32.xlu0 %v302, 15
        %v424 = vpop.permute.xlu0 %423
        %vm425 = vcmp.lt.s32.totalorder %v327, 15
        %v426 = vsel %vm425, %v410, %v418
        %v427 = vsel %vm425, %v412, %v420
        %v428 = vsel %vm425, %v414, %v422
        %v429 = vsel %vm425, %v416, %v424
        %v430 = vsel %vm425, %v418, %v410
        %v431 = vsel %vm425, %v420, %v412
        %v432 = vsel %vm425, %v422, %v414
        %v433 = vsel %vm425, %v424, %v416
        %vm434 = vmand %vm307, %vm308
        %v435 = vsel %vm434, 1, 0
        %v436 = vlaneseq
        %v437 = vshrl.u32 %v436, 7
        %v438 = vsub.s32 0, %v437
        %v439 = vrot.slane %v435, %v438
        %v440 = vlaneseq
        %v441 = vshrl.u32 %v440, 7
        %v442 = vsub.s32 1, %v441
        %v443 = vrot.slane %v435, %v442
        %vm444 = vcmp.eq.s32.totalorder %v439, 1
        %vm445 = vcmp.eq.s32.totalorder %v443, 1
        %v446 = vsel %vm444, %v430, 0.0
        %v447 = vsel %vm445, %v426, 0.0
        %v448 = vsel %vm444, %v431, 0.0
        %v449 = vsel %vm445, %v427, 0.0
        %v450 = vsel %vm444, %v432, 0.0
        %v451 = vsel %vm445, %v428, 0.0
        %v452 = vsel %vm444, %v433, 0.0
        %v453 = vsel %vm445, %v429, 0.0
        %v454 = vpack.c.bf16 %v448, %v446
        %v455 = vpack.c.bf16 %v449, %v447
        %v456 = vpack.c.bf16 %v452, %v450
        %v457 = vpack.c.bf16 %v453, %v451
        %458 = vrot.lane.b32.xlu0 %v295, 1
        %v459 = vpop.permute.xlu0 %458
        %460 = vrot.lane.b32.xlu0 %v297, 1
        %v461 = vpop.permute.xlu0 %460
        %462 = vrot.lane.b32.xlu0 %v299, 1
        %v463 = vpop.permute.xlu0 %462
        %464 = vrot.lane.b32.xlu0 %v301, 1
        %v465 = vpop.permute.xlu0 %464
        %466 = vrot.lane.b32.xlu0 %v296, 1
        %v467 = vpop.permute.xlu0 %466
        %468 = vrot.lane.b32.xlu0 %v298, 1
        %v469 = vpop.permute.xlu0 %468
        %470 = vrot.lane.b32.xlu0 %v300, 1
        %v471 = vpop.permute.xlu0 %470
        %472 = vrot.lane.b32.xlu0 %v302, 1
        %v473 = vpop.permute.xlu0 %472
        %vm474 = vcmp.lt.s32.totalorder %v327, 1
        %v475 = vsel %vm474, %v459, %v467
        %v476 = vsel %vm474, %v461, %v469
        %v477 = vsel %vm474, %v463, %v471
        %v478 = vsel %vm474, %v465, %v473
        %v479 = vsel %vm474, %v467, %v459
        %v480 = vsel %vm474, %v469, %v461
        %v481 = vsel %vm474, %v471, %v463
        %v482 = vsel %vm474, %v473, %v465
        %v483 = vsel %vm306, 1, 0
        %v484 = vlaneseq
        %v485 = vshrl.u32 %v484, 7
        %v486 = vsub.s32 0, %v485
        %v487 = vrot.slane %v483, %v486
        %v488 = vlaneseq
        %v489 = vshrl.u32 %v488, 7
        %v490 = vsub.s32 1, %v489
        %v491 = vrot.slane %v483, %v490
        %vm492 = vcmp.eq.s32.totalorder %v487, 1
        %vm493 = vcmp.eq.s32.totalorder %v491, 1
        %v494 = vsel %vm492, %v479, 0.0
        %v495 = vsel %vm493, %v475, 0.0
        %v496 = vsel %vm492, %v480, 0.0
        %v497 = vsel %vm493, %v476, 0.0
        %v498 = vsel %vm492, %v481, 0.0
        %v499 = vsel %vm493, %v477, 0.0
        %v500 = vsel %vm492, %v482, 0.0
        %v501 = vsel %vm493, %v478, 0.0
        %v502 = vpack.c.bf16 %v496, %v494
        %v503 = vpack.c.bf16 %v497, %v495
        %v504 = vpack.c.bf16 %v500, %v498
        %v505 = vpack.c.bf16 %v501, %v499
        %506 = vrot.lane.b32.xlu0 %v295, 127
        %v507 = vpop.permute.xlu0 %506
        %508 = vrot.lane.b32.xlu0 %v297, 127
        %v509 = vpop.permute.xlu0 %508
        %510 = vrot.lane.b32.xlu0 %v299, 127
        %v511 = vpop.permute.xlu0 %510
        %512 = vrot.lane.b32.xlu0 %v301, 127
        %v513 = vpop.permute.xlu0 %512
        %514 = vrot.lane.b32.xlu0 %v296, 127
        %v515 = vpop.permute.xlu0 %514
        %516 = vrot.lane.b32.xlu0 %v298, 127
        %v517 = vpop.permute.xlu0 %516
        %518 = vrot.lane.b32.xlu0 %v300, 127
        %v519 = vpop.permute.xlu0 %518
        %520 = vrot.lane.b32.xlu0 %v302, 127
        %v521 = vpop.permute.xlu0 %520
        %vm522 = vcmp.lt.s32.totalorder %v327, 127
        %v523 = vsel %vm522, %v507, %v515
        %v524 = vsel %vm522, %v509, %v517
        %v525 = vsel %vm522, %v511, %v519
        %v526 = vsel %vm522, %v513, %v521
        %v527 = vsel %vm522, %v515, %v507
        %v528 = vsel %vm522, %v517, %v509
        %v529 = vsel %vm522, %v519, %v511
        %v530 = vsel %vm522, %v521, %v513
        %v531 = vsel %vm307, 1, 0
        %v532 = vlaneseq
        %v533 = vshrl.u32 %v532, 7
        %v534 = vsub.s32 0, %v533
        %v535 = vrot.slane %v531, %v534
        %v536 = vlaneseq
        %v537 = vshrl.u32 %v536, 7
        %v538 = vsub.s32 1, %v537
        %v539 = vrot.slane %v531, %v538
        %vm540 = vcmp.eq.s32.totalorder %v535, 1
        %vm541 = vcmp.eq.s32.totalorder %v539, 1
        %v542 = vsel %vm540, %v523, 0.0
        %v543 = vsel %vm541, %v527, 0.0
        %v544 = vsel %vm540, %v524, 0.0
        %v545 = vsel %vm541, %v528, 0.0
        %v546 = vsel %vm540, %v525, 0.0
        %v547 = vsel %vm541, %v529, 0.0
        %v548 = vsel %vm540, %v526, 0.0
        %v549 = vsel %vm541, %v530, 0.0
        %v550 = vpack.c.bf16 %v544, %v542
        %v551 = vpack.c.bf16 %v545, %v543
        %v552 = vpack.c.bf16 %v548, %v546
        %v553 = vpack.c.bf16 %v549, %v547
        %554 = vrot.lane.b32.xlu0 %v295, 113
        %v555 = vpop.permute.xlu0 %554
        %556 = vrot.lane.b32.xlu0 %v297, 113
        %v557 = vpop.permute.xlu0 %556
        %558 = vrot.lane.b32.xlu0 %v299, 113
        %v559 = vpop.permute.xlu0 %558
        %560 = vrot.lane.b32.xlu0 %v301, 113
        %v561 = vpop.permute.xlu0 %560
        %562 = vrot.lane.b32.xlu0 %v296, 113
        %v563 = vpop.permute.xlu0 %562
        %564 = vrot.lane.b32.xlu0 %v298, 113
        %v565 = vpop.permute.xlu0 %564
        %566 = vrot.lane.b32.xlu0 %v300, 113
        %v567 = vpop.permute.xlu0 %566
        %568 = vrot.lane.b32.xlu0 %v302, 113
        %v569 = vpop.permute.xlu0 %568
        %vm570 = vcmp.lt.s32.totalorder %v327, 113
        %v571 = vsel %vm570, %v555, %v563
        %v572 = vsel %vm570, %v557, %v565
        %v573 = vsel %vm570, %v559, %v567
        %v574 = vsel %vm570, %v561, %v569
        %v575 = vsel %vm570, %v563, %v555
        %v576 = vsel %vm570, %v565, %v557
        %v577 = vsel %vm570, %v567, %v559
        %v578 = vsel %vm570, %v569, %v561
        %vm579 = vmand %vm306, %vm309
        %v580 = vsel %vm579, 1, 0
        %v581 = vlaneseq
        %v582 = vshrl.u32 %v581, 7
        %v583 = vsub.s32 0, %v582
        %v584 = vrot.slane %v580, %v583
        %v585 = vlaneseq
        %v586 = vshrl.u32 %v585, 7
        %v587 = vsub.s32 1, %v586
        %v588 = vrot.slane %v580, %v587
        %vm589 = vcmp.eq.s32.totalorder %v584, 1
        %vm590 = vcmp.eq.s32.totalorder %v588, 1
        %v591 = vsel %vm589, %v571, 0.0
        %v592 = vsel %vm590, %v575, 0.0
        %v593 = vsel %vm589, %v572, 0.0
        %v594 = vsel %vm590, %v576, 0.0
        %v595 = vsel %vm589, %v573, 0.0
        %v596 = vsel %vm590, %v577, 0.0
        %v597 = vsel %vm589, %v574, 0.0
        %v598 = vsel %vm590, %v578, 0.0
        %v599 = vpack.c.bf16 %v593, %v591
        %v600 = vpack.c.bf16 %v594, %v592
        %v601 = vpack.c.bf16 %v597, %v595
        %v602 = vpack.c.bf16 %v598, %v596
        %603 = vrot.lane.b32.xlu0 %v295, 112
        %v604 = vpop.permute.xlu0 %603
        %605 = vrot.lane.b32.xlu0 %v297, 112
        %v606 = vpop.permute.xlu0 %605
        %607 = vrot.lane.b32.xlu0 %v299, 112
        %v608 = vpop.permute.xlu0 %607
        %609 = vrot.lane.b32.xlu0 %v301, 112
        %v610 = vpop.permute.xlu0 %609
        %611 = vrot.lane.b32.xlu0 %v296, 112
        %v612 = vpop.permute.xlu0 %611
        %613 = vrot.lane.b32.xlu0 %v298, 112
        %v614 = vpop.permute.xlu0 %613
        %615 = vrot.lane.b32.xlu0 %v300, 112
        %v616 = vpop.permute.xlu0 %615
        %617 = vrot.lane.b32.xlu0 %v302, 112
        %v618 = vpop.permute.xlu0 %617
        %vm619 = vcmp.lt.s32.totalorder %v327, 112
        %v620 = vsel %vm619, %v604, %v612
        %v621 = vsel %vm619, %v606, %v614
        %v622 = vsel %vm619, %v608, %v616
        %v623 = vsel %vm619, %v610, %v618
        %v624 = vsel %vm619, %v612, %v604
        %v625 = vsel %vm619, %v614, %v606
        %v626 = vsel %vm619, %v616, %v608
        %v627 = vsel %vm619, %v618, %v610
        %v628 = vsel %vm309, 1, 0
        %v629 = vlaneseq
        %v630 = vshrl.u32 %v629, 7
        %v631 = vsub.s32 0, %v630
        %v632 = vrot.slane %v628, %v631
        %v633 = vlaneseq
        %v634 = vshrl.u32 %v633, 7
        %v635 = vsub.s32 1, %v634
        %v636 = vrot.slane %v628, %v635
        %vm637 = vcmp.eq.s32.totalorder %v632, 1
        %vm638 = vcmp.eq.s32.totalorder %v636, 1
        %v639 = vsel %vm637, %v620, 0.0
        %v640 = vsel %vm638, %v624, 0.0
        %v641 = vsel %vm637, %v621, 0.0
        %v642 = vsel %vm638, %v625, 0.0
        %v643 = vsel %vm637, %v622, 0.0
        %v644 = vsel %vm638, %v626, 0.0
        %v645 = vsel %vm637, %v623, 0.0
        %v646 = vsel %vm638, %v627, 0.0
        %v647 = vpack.c.bf16 %v641, %v639
        %v648 = vpack.c.bf16 %v642, %v640
        %v649 = vpack.c.bf16 %v645, %v643
        %v650 = vpack.c.bf16 %v646, %v644
        %651 = vrot.lane.b32.xlu0 %v295, 111
        %v652 = vpop.permute.xlu0 %651
        %653 = vrot.lane.b32.xlu0 %v297, 111
        %v654 = vpop.permute.xlu0 %653
        %655 = vrot.lane.b32.xlu0 %v299, 111
        %v656 = vpop.permute.xlu0 %655
        %657 = vrot.lane.b32.xlu0 %v301, 111
        %v658 = vpop.permute.xlu0 %657
        %659 = vrot.lane.b32.xlu0 %v296, 111
        %v660 = vpop.permute.xlu0 %659
        %661 = vrot.lane.b32.xlu0 %v298, 111
        %v662 = vpop.permute.xlu0 %661
        %663 = vrot.lane.b32.xlu0 %v300, 111
        %v664 = vpop.permute.xlu0 %663
        %665 = vrot.lane.b32.xlu0 %v302, 111
        %v666 = vpop.permute.xlu0 %665
        %vm667 = vcmp.lt.s32.totalorder %v327, 111
        %v668 = vsel %vm667, %v652, %v660
        %v669 = vsel %vm667, %v654, %v662
        %v670 = vsel %vm667, %v656, %v664
        %v671 = vsel %vm667, %v658, %v666
        %v672 = vsel %vm667, %v660, %v652
        %v673 = vsel %vm667, %v662, %v654
        %v674 = vsel %vm667, %v664, %v656
        %v675 = vsel %vm667, %v666, %v658
        %vm676 = vmand %vm307, %vm309
        %v677 = vsel %vm676, 1, 0
        %v678 = vlaneseq
        %v679 = vshrl.u32 %v678, 7
        %v680 = vsub.s32 0, %v679
        %v681 = vrot.slane %v677, %v680
        %v682 = vlaneseq
        %v683 = vshrl.u32 %v682, 7
        %v684 = vsub.s32 1, %v683
        %v685 = vrot.slane %v677, %v684
        %vm686 = vcmp.eq.s32.totalorder %v681, 1
        %vm687 = vcmp.eq.s32.totalorder %v685, 1
        %v688 = vsel %vm686, %v668, 0.0
        %v689 = vsel %vm687, %v672, 0.0
        %v690 = vsel %vm686, %v669, 0.0
        %v691 = vsel %vm687, %v673, 0.0
        %v692 = vsel %vm686, %v670, 0.0
        %v693 = vsel %vm687, %v674, 0.0
        %v694 = vsel %vm686, %v671, 0.0
        %v695 = vsel %vm687, %v675, 0.0
        %v696 = vpack.c.bf16 %v690, %v688
        %v697 = vpack.c.bf16 %v691, %v689
        %v698 = vpack.c.bf16 %v694, %v692
        %v699 = vpack.c.bf16 %v695, %v693
        %v704 = vunpack.c.l.b16 %v291
        %v705 = vunpack.c.h.b16 %v291
        %v706 = vunpack.c.l.b16 %v292
        %v707 = vunpack.c.h.b16 %v292
        %v708 = vunpack.c.l.b16 %v293
        %v709 = vunpack.c.h.b16 %v293
        %v710 = vunpack.c.l.b16 %v294
        %v711 = vunpack.c.h.b16 %v294
        %v712 = vpack.c.b16 %v706, %v704
        %v713 = vpack.c.b16 %v707, %v705
        %v714 = vpack.c.b16 %v710, %v708
        %v715 = vpack.c.b16 %v711, %v709
        %v720 = vld [vmem:[%s2] sm:$0xff]
        %v721 = vld [vmem:[%s2 + $0x8] sm:$0xf]
        %v722 = vld [vmem:[%s2 + $0xc] sm:$0xff]
        %v723 = vld [vmem:[%s2 + $0x14] sm:$0xf]
        %v724 = vld [vmem:[%s2 + $0x18] sm:$0xff]
        %v725 = vld [vmem:[%s2 + $0x20] sm:$0xf]
        %v726 = vld [vmem:[%s2 + $0x24] sm:$0xff]
        %v727 = vld [vmem:[%s2 + $0x2c] sm:$0xf]
        %v728 = vld [vmem:[%s2 + $0x30] sm:$0xff]
        %v729 = vld [vmem:[%s2 + $0x38] sm:$0xf]
        %v730 = vld [vmem:[%s2 + $0x3c] sm:$0xff]
        %v731 = vld [vmem:[%s2 + $0x44] sm:$0xf]
        %v732 = vld [vmem:[%s2 + $0x48] sm:$0xff]
        %v733 = vld [vmem:[%s2 + $0x50] sm:$0xf]
        %v734 = vld [vmem:[%s2 + $0x54] sm:$0xff]
        %v735 = vld [vmem:[%s2 + $0x5c] sm:$0xf]
        %v736 = vld [vmem:[%s2 + $0x60] sm:$0xff]
        %v737 = vld [vmem:[%s2 + $0x68] sm:$0xf]
        %v738 = vld [vmem:[%s2 + $0x6c] sm:$0xff]
        %v739 = vld [vmem:[%s2 + $0x74] sm:$0xf]
        %v740 = vld [vmem:[%s2 + $0x78] sm:$0xff]
        %v741 = vld [vmem:[%s2 + $0x80] sm:$0xf]
        %v742 = vld [vmem:[%s2 + $0x84] sm:$0xff]
        %v743 = vld [vmem:[%s2 + $0x8c] sm:$0xf]
        %v744 = vld [vmem:[%s2 + $0x90] sm:$0xff]
        %v745 = vld [vmem:[%s2 + $0x98] sm:$0xf]
        %v746 = vld [vmem:[%s2 + $0x9c] sm:$0xff]
        %v747 = vld [vmem:[%s2 + $0xa4] sm:$0xf]
        %v748 = vld [vmem:[%s2 + $0xa8] sm:$0xff]
        %v749 = vld [vmem:[%s2 + $0xb0] sm:$0xf]
        %v750 = vld [vmem:[%s2 + $0xb4] sm:$0xff]
        %v751 = vld [vmem:[%s2 + $0xbc] sm:$0xf]
        %v752 = vld [vmem:[%s2 + $0xc0] sm:$0xff]
        %v753 = vld [vmem:[%s2 + $0xc8] sm:$0xf]
        %v754 = vld [vmem:[%s2 + $0xcc] sm:$0xff]
        %v755 = vld [vmem:[%s2 + $0xd4] sm:$0xf]
        %v756 = vld [vmem:[%s2 + $0xd8] sm:$0xff]
        %v757 = vld [vmem:[%s2 + $0xe0] sm:$0xf]
        %v758 = vld [vmem:[%s2 + $0xe4] sm:$0xff]
        %v759 = vld [vmem:[%s2 + $0xec] sm:$0xf]
        %v760 = vld [vmem:[%s3] sm:$0xff]
        %v761 = vld [vmem:[%s3 + $0x8] sm:$0xff]
        %v762 = vld [vmem:[%s3 + $0x10] sm:$0xff]
        %v763 = vld [vmem:[%s3 + $0x18] sm:$0xff]
        %v764 = vld [vmem:[%s3 + $0x20] sm:$0xff]
        %v765 = vld [vmem:[%s3 + $0x28] sm:$0xff]
        %v766 = vld [vmem:[%s3 + $0x30] sm:$0xff]
        %v767 = vld [vmem:[%s3 + $0x38] sm:$0xff]
        %v768 = vld [vmem:[%s3 + $0x40] sm:$0xff]
        %v769 = vld [vmem:[%s3 + $0x48] sm:$0xff]
        %v770 = vld [vmem:[%s3 + $0x50] sm:$0xff]
        %v771 = vld [vmem:[%s3 + $0x58] sm:$0xff]
        %v772 = vld [vmem:[%s3 + $0x60] sm:$0xff]
        %v773 = vld [vmem:[%s3 + $0x68] sm:$0xff]
        %v774 = vld [vmem:[%s3 + $0x70] sm:$0xff]
        %v775 = vld [vmem:[%s3 + $0x78] sm:$0xff]
        %v776 = vld [vmem:[%s3 + $0x80] sm:$0xff]
        %v777 = vld [vmem:[%s3 + $0x88] sm:$0xff]
        %v778 = vld [vmem:[%s3 + $0x90] sm:$0xff]
        %v779 = vld [vmem:[%s3 + $0x98] sm:$0xff]
        %781 = vset.pattern.permute.xlu0 0
        %782 = vperm.xlu0 %781, %v760
        %v783 = vpop.permute.xlu0 %782
        %786 = vset.pattern.permute.xlu0 0
        %787 = vperm.xlu0 %786, %v761
        %v788 = vpop.permute.xlu0 %787
        %791 = vset.pattern.permute.xlu0 0
        %792 = vperm.xlu0 %791, %v762
        %v793 = vpop.permute.xlu0 %792
        %796 = vset.pattern.permute.xlu0 0
        %797 = vperm.xlu0 %796, %v763
        %v798 = vpop.permute.xlu0 %797
        %801 = vset.pattern.permute.xlu0 0
        %802 = vperm.xlu0 %801, %v764
        %v803 = vpop.permute.xlu0 %802
        %806 = vset.pattern.permute.xlu0 0
        %807 = vperm.xlu0 %806, %v765
        %v808 = vpop.permute.xlu0 %807
        %811 = vset.pattern.permute.xlu0 0
        %812 = vperm.xlu0 %811, %v766
        %v813 = vpop.permute.xlu0 %812
        %816 = vset.pattern.permute.xlu0 0
        %817 = vperm.xlu0 %816, %v767
        %v818 = vpop.permute.xlu0 %817
        %821 = vset.pattern.permute.xlu0 0
        %822 = vperm.xlu0 %821, %v768
        %v823 = vpop.permute.xlu0 %822
        %826 = vset.pattern.permute.xlu0 0
        %827 = vperm.xlu0 %826, %v769
        %v828 = vpop.permute.xlu0 %827
        %831 = vset.pattern.permute.xlu0 0
        %832 = vperm.xlu0 %831, %v770
        %v833 = vpop.permute.xlu0 %832
        %836 = vset.pattern.permute.xlu0 0
        %837 = vperm.xlu0 %836, %v771
        %v838 = vpop.permute.xlu0 %837
        %841 = vset.pattern.permute.xlu0 0
        %842 = vperm.xlu0 %841, %v772
        %v843 = vpop.permute.xlu0 %842
        %846 = vset.pattern.permute.xlu0 0
        %847 = vperm.xlu0 %846, %v773
        %v848 = vpop.permute.xlu0 %847
        %851 = vset.pattern.permute.xlu0 0
        %852 = vperm.xlu0 %851, %v774
        %v853 = vpop.permute.xlu0 %852
        %856 = vset.pattern.permute.xlu0 0
        %857 = vperm.xlu0 %856, %v775
        %v858 = vpop.permute.xlu0 %857
        %861 = vset.pattern.permute.xlu0 0
        %862 = vperm.xlu0 %861, %v776
        %v863 = vpop.permute.xlu0 %862
        %866 = vset.pattern.permute.xlu0 0
        %867 = vperm.xlu0 %866, %v777
        %v868 = vpop.permute.xlu0 %867
        %871 = vset.pattern.permute.xlu0 0
        %872 = vperm.xlu0 %871, %v778
        %v873 = vpop.permute.xlu0 %872
        %876 = vset.pattern.permute.xlu0 0
        %877 = vperm.xlu0 %876, %v779
        %v878 = vpop.permute.xlu0 %877
        %v920 = vunpack.c.l.b16 %v720
        %v921 = vunpack.c.h.b16 %v720
        %v922 = vunpack.c.l.b16 %v721
        %v923 = vunpack.c.l.b16 %v722
        %v924 = vunpack.c.h.b16 %v722
        %v925 = vunpack.c.l.b16 %v723
        %v926 = vunpack.c.l.b16 %v724
        %v927 = vunpack.c.h.b16 %v724
        %v928 = vunpack.c.l.b16 %v725
        %v929 = vunpack.c.l.b16 %v726
        %v930 = vunpack.c.h.b16 %v726
        %v931 = vunpack.c.l.b16 %v727
        %v932 = vunpack.c.l.b16 %v728
        %v933 = vunpack.c.h.b16 %v728
        %v934 = vunpack.c.l.b16 %v729
        %v935 = vunpack.c.l.b16 %v730
        %v936 = vunpack.c.h.b16 %v730
        %v937 = vunpack.c.l.b16 %v731
        %v938 = vunpack.c.l.b16 %v732
        %v939 = vunpack.c.h.b16 %v732
        %v940 = vunpack.c.l.b16 %v733
        %v941 = vunpack.c.l.b16 %v734
        %v942 = vunpack.c.h.b16 %v734
        %v943 = vunpack.c.l.b16 %v735
        %v944 = vunpack.c.l.b16 %v736
        %v945 = vunpack.c.h.b16 %v736
        %v946 = vunpack.c.l.b16 %v737
        %v947 = vunpack.c.l.b16 %v738
        %v948 = vunpack.c.h.b16 %v738
        %v949 = vunpack.c.l.b16 %v739
        %v950 = vunpack.c.l.b16 %v740
        %v951 = vunpack.c.h.b16 %v740
        %v952 = vunpack.c.l.b16 %v741
        %v953 = vunpack.c.l.b16 %v742
        %v954 = vunpack.c.h.b16 %v742
        %v955 = vunpack.c.l.b16 %v743
        %v956 = vunpack.c.l.b16 %v744
        %v957 = vunpack.c.h.b16 %v744
        %v958 = vunpack.c.l.b16 %v745
        %v959 = vunpack.c.l.b16 %v746
        %v960 = vunpack.c.h.b16 %v746
        %v961 = vunpack.c.l.b16 %v747
        %v962 = vunpack.c.l.b16 %v748
        %v963 = vunpack.c.h.b16 %v748
        %v964 = vunpack.c.l.b16 %v749
        %v965 = vunpack.c.l.b16 %v750
        %v966 = vunpack.c.h.b16 %v750
        %v967 = vunpack.c.l.b16 %v751
        %v968 = vunpack.c.l.b16 %v752
        %v969 = vunpack.c.h.b16 %v752
        %v970 = vunpack.c.l.b16 %v753
        %v971 = vunpack.c.l.b16 %v754
        %v972 = vunpack.c.h.b16 %v754
        %v973 = vunpack.c.l.b16 %v755
        %v974 = vunpack.c.l.b16 %v756
        %v975 = vunpack.c.h.b16 %v756
        %v976 = vunpack.c.l.b16 %v757
        %v977 = vunpack.c.l.b16 %v758
        %v978 = vunpack.c.h.b16 %v758
        %v979 = vunpack.c.l.b16 %v759
        %v980 = vpack.c.b16 %v923, %v920
        %v981 = vpack.c.b16 %v924, %v921
        %v982 = vpack.c.b16 %v925, %v922
        %v983 = vpack.c.b16 %v929, %v926
        %v984 = vpack.c.b16 %v930, %v927
        %v985 = vpack.c.b16 %v931, %v928
        %v986 = vpack.c.b16 %v935, %v932
        %v987 = vpack.c.b16 %v936, %v933
        %v988 = vpack.c.b16 %v937, %v934
        %v989 = vpack.c.b16 %v941, %v938
        %v990 = vpack.c.b16 %v942, %v939
        %v991 = vpack.c.b16 %v943, %v940
        %v992 = vpack.c.b16 %v947, %v944
        %v993 = vpack.c.b16 %v948, %v945
        %v994 = vpack.c.b16 %v949, %v946
        %v995 = vpack.c.b16 %v953, %v950
        %v996 = vpack.c.b16 %v954, %v951
        %v997 = vpack.c.b16 %v955, %v952
        %v998 = vpack.c.b16 %v959, %v956
        %v999 = vpack.c.b16 %v960, %v957
        %v1000 = vpack.c.b16 %v961, %v958
        %v1001 = vpack.c.b16 %v965, %v962
        %v1002 = vpack.c.b16 %v966, %v963
        %v1003 = vpack.c.b16 %v967, %v964
        %v1004 = vpack.c.b16 %v971, %v968
        %v1005 = vpack.c.b16 %v972, %v969
        %v1006 = vpack.c.b16 %v973, %v970
        %v1007 = vpack.c.b16 %v977, %v974
        %v1008 = vpack.c.b16 %v978, %v975
        %v1009 = vpack.c.b16 %v979, %v976
        %vm1030 = vcmask 261120
        %v1032 = vsel %vm1030, %v982, 0
        %v1035 = vsel %vm1030, %v985, 0
        %v1038 = vsel %vm1030, %v988, 0
        %v1041 = vsel %vm1030, %v991, 0
        %v1044 = vsel %vm1030, %v994, 0
        %v1047 = vsel %vm1030, %v997, 0
        %v1050 = vsel %vm1030, %v1000, 0
        %v1053 = vsel %vm1030, %v1003, 0
        %v1056 = vsel %vm1030, %v1006, 0
        %v1059 = vsel %vm1030, %v1009, 0
        %1061 = vmatprep.subr.bf16.mxu0 %v358
        %1062 = vmatpush1.bf16.msra.mxu0 %v357
        %1063 = vmatprep.subr.bf16.mxu0 %v360
        %1064 = vmatpush1.bf16.msra.mxu0 %v359
        %1065 = vmatprep.subr.bf16.mxu0 %v406
        %1066 = vmatpush1.bf16.msra.mxu0 %v405
        %1067 = vmatprep.subr.bf16.mxu0 %v408
        %1068 = vmatpush1.bf16.msra.mxu0 %v407
        %1069 = vmatprep.subr.bf16.mxu0 %v455
        %1070 = vmatpush1.bf16.msra.mxu0 %v454
        %1071 = vmatprep.subr.bf16.mxu0 %v457
        %1072 = vmatpush1.bf16.msra.mxu0 %v456
        %1073 = vmatprep.subr.bf16.mxu0 %v503
        %1074 = vmatpush1.bf16.msra.mxu0 %v502
        %1075 = vmatprep.subr.bf16.mxu0 %v505
        %1076 = vmatpush1.bf16.msra.mxu0 %v504
        %1077 = vmatprep.subr.bf16.mxu0 %v713
        %1078 = vmatpush1.bf16.msra.mxu0 %v712
        %1079 = vmatprep.subr.bf16.mxu0 %v715
        %1080 = vmatpush1.bf16.msra.mxu0 %v714
        %1081 = vmatprep.subr.bf16.mxu0 %v551
        %1082 = vmatpush1.bf16.msra.mxu0 %v550
        %1083 = vmatprep.subr.bf16.mxu0 %v553
        %1084 = vmatpush1.bf16.msra.mxu0 %v552
        %1085 = vmatprep.subr.bf16.mxu0 %v600
        %1086 = vmatpush1.bf16.msra.mxu0 %v599
        %1087 = vmatprep.subr.bf16.mxu0 %v602
        %1088 = vmatpush1.bf16.msra.mxu0 %v601
        %1089 = vmatprep.subr.bf16.mxu0 %v648
        %1090 = vmatpush1.bf16.msra.mxu0 %v647
        %1091 = vmatprep.subr.bf16.mxu0 %v650
        %1092 = vmatpush1.bf16.msra.mxu0 %v649
        %1093 = vmatprep.mubr.bf16.mxu0 %v981
        %1094 = vmatmul.mubr.bf16.gmra.mrb[0].mxu0 %v980
        %v1095 = vpop.f32.mrb[0].mxu0
        %v1096 = vadd.f32 %v783, %v1095
        %v1097 = vpop.f32.mrb[0].mxu0
        %v1098 = vadd.f32 %v783, %v1097
        %v1099 = vpop.f32.mrb[0].mxu0
        %v1100 = vadd.f32 %v788, %v1099
        %v1101 = vpop.f32.mrb[0].mxu0
        %v1102 = vadd.f32 %v788, %v1101
        %1103 = vmatprep.mubr.bf16.mxu0 %v984
        %1104 = vmatmul.mubr.bf16.gmra.mrb[0].mxu0 %v983
        %v1105 = vpop.f32.mrb[0].mxu0
        %v1106 = vadd.f32 %v793, %v1105
        %v1107 = vpop.f32.mrb[0].mxu0
        %v1108 = vadd.f32 %v793, %v1107
        %v1109 = vpop.f32.mrb[0].mxu0
        %v1110 = vadd.f32 %v798, %v1109
        %v1111 = vpop.f32.mrb[0].mxu0
        %v1112 = vadd.f32 %v798, %v1111
        %1113 = vmatprep.mubr.bf16.mxu0 %v987
        %1114 = vmatmul.mubr.bf16.gmra.mrb[0].mxu0 %v986
        %v1115 = vpop.f32.mrb[0].mxu0
        %v1116 = vadd.f32 %v803, %v1115
        %v1117 = vpop.f32.mrb[0].mxu0
        %v1118 = vadd.f32 %v803, %v1117
        %v1119 = vpop.f32.mrb[0].mxu0
        %v1120 = vadd.f32 %v808, %v1119
        %v1121 = vpop.f32.mrb[0].mxu0
        %v1122 = vadd.f32 %v808, %v1121
        %1123 = vmatprep.mubr.bf16.mxu0 %v990
        %1124 = vmatmul.mubr.bf16.gmra.mrb[0].mxu0 %v989
        %v1125 = vpop.f32.mrb[0].mxu0
        %v1126 = vadd.f32 %v813, %v1125
        %v1127 = vpop.f32.mrb[0].mxu0
        %v1128 = vadd.f32 %v813, %v1127
        %v1129 = vpop.f32.mrb[0].mxu0
        %v1130 = vadd.f32 %v818, %v1129
        %v1131 = vpop.f32.mrb[0].mxu0
        %v1132 = vadd.f32 %v818, %v1131
        %1133 = vmatprep.mubr.bf16.mxu0 %v993
        %1134 = vmatmul.mubr.bf16.gmra.mrb[0].mxu0 %v992
        %v1135 = vpop.f32.mrb[0].mxu0
        %v1136 = vadd.f32 %v823, %v1135
        %v1137 = vpop.f32.mrb[0].mxu0
        %v1138 = vadd.f32 %v823, %v1137
        %v1139 = vpop.f32.mrb[0].mxu0
        %v1140 = vadd.f32 %v828, %v1139
        %v1141 = vpop.f32.mrb[0].mxu0
        %v1142 = vadd.f32 %v828, %v1141
        %1143 = vmatprep.mubr.bf16.mxu0 %v996
        %1144 = vmatmul.mubr.bf16.gmra.mrb[0].mxu0 %v995
        %v1145 = vpop.f32.mrb[0].mxu0
        %v1146 = vadd.f32 %v833, %v1145
        %v1147 = vpop.f32.mrb[0].mxu0
        %v1148 = vadd.f32 %v833, %v1147
        %v1149 = vpop.f32.mrb[0].mxu0
        %v1150 = vadd.f32 %v838, %v1149
        %v1151 = vpop.f32.mrb[0].mxu0
        %v1152 = vadd.f32 %v838, %v1151
        %1153 = vmatprep.mubr.bf16.mxu0 %v999
        %1154 = vmatmul.mubr.bf16.gmra.mrb[0].mxu0 %v998
        %v1155 = vpop.f32.mrb[0].mxu0
        %v1156 = vadd.f32 %v843, %v1155
        %v1157 = vpop.f32.mrb[0].mxu0
        %v1158 = vadd.f32 %v843, %v1157
        %v1159 = vpop.f32.mrb[0].mxu0
        %v1160 = vadd.f32 %v848, %v1159
        %v1161 = vpop.f32.mrb[0].mxu0
        %v1162 = vadd.f32 %v848, %v1161
        %1163 = vmatprep.mubr.bf16.mxu0 %v1002
        %1164 = vmatmul.mubr.bf16.gmra.mrb[0].mxu0 %v1001
        %v1165 = vpop.f32.mrb[0].mxu0
        %v1166 = vadd.f32 %v853, %v1165
        %v1167 = vpop.f32.mrb[0].mxu0
        %v1168 = vadd.f32 %v853, %v1167
        %v1169 = vpop.f32.mrb[0].mxu0
        %v1170 = vadd.f32 %v858, %v1169
        %v1171 = vpop.f32.mrb[0].mxu0
        %v1172 = vadd.f32 %v858, %v1171
        %1173 = vmatprep.mubr.bf16.mxu0 %v1005
        %1174 = vmatmul.mubr.bf16.gmra.mrb[0].mxu0 %v1004
        %v1175 = vpop.f32.mrb[0].mxu0
        %v1176 = vadd.f32 %v863, %v1175
        %v1177 = vpop.f32.mrb[0].mxu0
        %v1178 = vadd.f32 %v863, %v1177
        %v1179 = vpop.f32.mrb[0].mxu0
        %v1180 = vadd.f32 %v868, %v1179
        %v1181 = vpop.f32.mrb[0].mxu0
        %v1182 = vadd.f32 %v868, %v1181
        %1183 = vmatprep.mubr.bf16.mxu0 %v1008
        %1184 = vmatmul.mubr.bf16.gmra.mrb[0].mxu0 %v1007
        %v1185 = vpop.f32.mrb[0].mxu0
        %v1186 = vadd.f32 %v873, %v1185
        %v1187 = vpop.f32.mrb[0].mxu0
        %v1188 = vadd.f32 %v873, %v1187
        %v1189 = vpop.f32.mrb[0].mxu0
        %v1190 = vadd.f32 %v878, %v1189
        %v1191 = vpop.f32.mrb[0].mxu0
        %v1192 = vadd.f32 %v878, %v1191
        %1193 = vdwg.mxu0
        %1194 = vmatprep.subr.bf16.mxu0 %v697
        %1195 = vmatpush1.bf16.msra.mxu0 %v696
        %1196 = vmatprep.subr.bf16.mxu0 %v699
        %1197 = vmatpush1.bf16.msra.mxu0 %v698
        %1198 = vmatprep.subr.bf16.mxu0 0
        %1199 = vmatpush1.bf16.msra.mxu0 0
        %1200 = vmatprep.subr.bf16.mxu0 0
        %1201 = vmatpush1.bf16.msra.mxu0 0
        %1202 = vmatprep.subr.bf16.mxu0 0
        %1203 = vmatpush1.bf16.msra.mxu0 0
        %1204 = vmatprep.subr.bf16.mxu0 0
        %1205 = vmatpush1.bf16.msra.mxu0 0
        %1206 = vmatprep.subr.bf16.mxu0 0
        %1207 = vmatpush1.bf16.msra.mxu0 0
        %1208 = vmatprep.subr.bf16.mxu0 0
        %1209 = vmatpush1.bf16.msra.mxu0 0
        %1210 = vmatprep.subr.bf16.mxu0 0
        %1211 = vmatpush1.bf16.msra.mxu0 0
        %1212 = vmatprep.subr.bf16.mxu0 0
        %1213 = vmatpush1.bf16.msra.mxu0 0
        %1214 = vmatprep.subr.bf16.mxu0 0
        %1215 = vmatpush1.bf16.msra.mxu0 0
        %1216 = vmatprep.subr.bf16.mxu0 0
        %1217 = vmatpush1.bf16.msra.mxu0 0
        %1218 = vmatprep.subr.bf16.mxu0 0
        %1219 = vmatpush1.bf16.msra.mxu0 0
        %1220 = vmatprep.subr.bf16.mxu0 0
        %1221 = vmatpush1.bf16.msra.mxu0 0
        %1222 = vmatprep.subr.bf16.mxu0 0
        %1223 = vmatpush1.bf16.msra.mxu0 0
        %1224 = vmatprep.subr.bf16.mxu0 0
        %1225 = vmatpush1.bf16.msra.mxu0 0
        %1226 = vmatprep.mubr.bf16.mxu0 0
        %1227 = vmatmul.mubr.bf16.gmra.mrb[0].mxu0 %v1032
        %v1228 = vpop.f32.mrb[0].mxu0
        %v1229 = vadd.f32 %v1096, %v1228
        %v1230 = vpop.f32.mrb[0].mxu0
        %v1231 = vadd.f32 %v1098, %v1230
        %v1232 = vpop.f32.mrb[0].mxu0
        %v1233 = vadd.f32 %v1100, %v1232
        %v1234 = vpop.f32.mrb[0].mxu0
        %v1235 = vadd.f32 %v1102, %v1234
        %1236 = vmatprep.mubr.bf16.mxu0 0
        %1237 = vmatmul.mubr.bf16.gmra.mrb[0].mxu0 %v1035
        %v1238 = vpop.f32.mrb[0].mxu0
        %v1239 = vadd.f32 %v1106, %v1238
        %v1240 = vpop.f32.mrb[0].mxu0
        %v1241 = vadd.f32 %v1108, %v1240
        %v1242 = vpop.f32.mrb[0].mxu0
        %v1243 = vadd.f32 %v1110, %v1242
        %v1244 = vpop.f32.mrb[0].mxu0
        %v1245 = vadd.f32 %v1112, %v1244
        %1246 = vmatprep.mubr.bf16.mxu0 0
        %1247 = vmatmul.mubr.bf16.gmra.mrb[0].mxu0 %v1038
        %v1248 = vpop.f32.mrb[0].mxu0
        %v1249 = vadd.f32 %v1116, %v1248
        %v1250 = vpop.f32.mrb[0].mxu0
        %v1251 = vadd.f32 %v1118, %v1250
        %v1252 = vpop.f32.mrb[0].mxu0
        %v1253 = vadd.f32 %v1120, %v1252
        %v1254 = vpop.f32.mrb[0].mxu0
        %v1255 = vadd.f32 %v1122, %v1254
        %1256 = vmatprep.mubr.bf16.mxu0 0
        %1257 = vmatmul.mubr.bf16.gmra.mrb[0].mxu0 %v1041
        %v1258 = vpop.f32.mrb[0].mxu0
        %v1259 = vadd.f32 %v1126, %v1258
        %v1260 = vpop.f32.mrb[0].mxu0
        %v1261 = vadd.f32 %v1128, %v1260
        %v1262 = vpop.f32.mrb[0].mxu0
        %v1263 = vadd.f32 %v1130, %v1262
        %v1264 = vpop.f32.mrb[0].mxu0
        %v1265 = vadd.f32 %v1132, %v1264
        %1266 = vmatprep.mubr.bf16.mxu0 0
        %1267 = vmatmul.mubr.bf16.gmra.mrb[0].mxu0 %v1044
        %v1268 = vpop.f32.mrb[0].mxu0
        %v1269 = vadd.f32 %v1136, %v1268
        %v1270 = vpop.f32.mrb[0].mxu0
        %v1271 = vadd.f32 %v1138, %v1270
        %v1272 = vpop.f32.mrb[0].mxu0
        %v1273 = vadd.f32 %v1140, %v1272
        %v1274 = vpop.f32.mrb[0].mxu0
        %v1275 = vadd.f32 %v1142, %v1274
        %1276 = vmatprep.mubr.bf16.mxu0 0
        %1277 = vmatmul.mubr.bf16.gmra.mrb[0].mxu0 %v1047
        %v1278 = vpop.f32.mrb[0].mxu0
        %v1279 = vadd.f32 %v1146, %v1278
        %v1280 = vpop.f32.mrb[0].mxu0
        %v1281 = vadd.f32 %v1148, %v1280
        %v1282 = vpop.f32.mrb[0].mxu0
        %v1283 = vadd.f32 %v1150, %v1282
        %v1284 = vpop.f32.mrb[0].mxu0
        %v1285 = vadd.f32 %v1152, %v1284
        %1286 = vmatprep.mubr.bf16.mxu0 0
        %1287 = vmatmul.mubr.bf16.gmra.mrb[0].mxu0 %v1050
        %v1288 = vpop.f32.mrb[0].mxu0
        %v1289 = vadd.f32 %v1156, %v1288
        %v1290 = vpop.f32.mrb[0].mxu0
        %v1291 = vadd.f32 %v1158, %v1290
        %v1292 = vpop.f32.mrb[0].mxu0
        %v1293 = vadd.f32 %v1160, %v1292
        %v1294 = vpop.f32.mrb[0].mxu0
        %v1295 = vadd.f32 %v1162, %v1294
        %1296 = vmatprep.mubr.bf16.mxu0 0
        %1297 = vmatmul.mubr.bf16.gmra.mrb[0].mxu0 %v1053
        %v1298 = vpop.f32.mrb[0].mxu0
        %v1299 = vadd.f32 %v1166, %v1298
        %v1300 = vpop.f32.mrb[0].mxu0
        %v1301 = vadd.f32 %v1168, %v1300
        %v1302 = vpop.f32.mrb[0].mxu0
        %v1303 = vadd.f32 %v1170, %v1302
        %v1304 = vpop.f32.mrb[0].mxu0
        %v1305 = vadd.f32 %v1172, %v1304
        %1306 = vmatprep.mubr.bf16.mxu0 0
        %1307 = vmatmul.mubr.bf16.gmra.mrb[0].mxu0 %v1056
        %v1308 = vpop.f32.mrb[0].mxu0
        %v1309 = vadd.f32 %v1176, %v1308
        %v1310 = vpop.f32.mrb[0].mxu0
        %v1311 = vadd.f32 %v1178, %v1310
        %v1312 = vpop.f32.mrb[0].mxu0
        %v1313 = vadd.f32 %v1180, %v1312
        %v1314 = vpop.f32.mrb[0].mxu0
        %v1315 = vadd.f32 %v1182, %v1314
        %1316 = vmatprep.mubr.bf16.mxu0 0
        %1317 = vmatmul.mubr.bf16.gmra.mrb[0].mxu0 %v1059
        %v1318 = vpop.f32.mrb[0].mxu0
        %v1319 = vadd.f32 %v1186, %v1318
        %v1320 = vpop.f32.mrb[0].mxu0
        %v1321 = vadd.f32 %v1188, %v1320
        %v1322 = vpop.f32.mrb[0].mxu0
        %v1323 = vadd.f32 %v1190, %v1322
        %v1324 = vpop.f32.mrb[0].mxu0
        %v1325 = vadd.f32 %v1192, %v1324
        %1326 = vdwg.mxu0
        %v1327 = vmax.f32 %v1229, 0.0
        %v1328 = vmax.f32 %v1231, 0.0
        %v1329 = vmax.f32 %v1233, 0.0
        %v1330 = vmax.f32 %v1235, 0.0
        %v1331 = vmax.f32 %v1239, 0.0
        %v1332 = vmax.f32 %v1241, 0.0
        %v1333 = vmax.f32 %v1243, 0.0
        %v1334 = vmax.f32 %v1245, 0.0
        %v1335 = vmax.f32 %v1249, 0.0
        %v1336 = vmax.f32 %v1251, 0.0
        %v1337 = vmax.f32 %v1253, 0.0
        %v1338 = vmax.f32 %v1255, 0.0
        %v1339 = vmax.f32 %v1259, 0.0
        %v1340 = vmax.f32 %v1261, 0.0
        %v1341 = vmax.f32 %v1263, 0.0
        %v1342 = vmax.f32 %v1265, 0.0
        %v1343 = vmax.f32 %v1269, 0.0
        %v1344 = vmax.f32 %v1271, 0.0
        %v1345 = vmax.f32 %v1273, 0.0
        %v1346 = vmax.f32 %v1275, 0.0
        %v1347 = vmax.f32 %v1279, 0.0
        %v1348 = vmax.f32 %v1281, 0.0
        %v1349 = vmax.f32 %v1283, 0.0
        %v1350 = vmax.f32 %v1285, 0.0
        %v1351 = vmax.f32 %v1289, 0.0
        %v1352 = vmax.f32 %v1291, 0.0
        %v1353 = vmax.f32 %v1293, 0.0
        %v1354 = vmax.f32 %v1295, 0.0
        %v1355 = vmax.f32 %v1299, 0.0
        %v1356 = vmax.f32 %v1301, 0.0
        %v1357 = vmax.f32 %v1303, 0.0
        %v1358 = vmax.f32 %v1305, 0.0
        %v1359 = vmax.f32 %v1309, 0.0
        %v1360 = vmax.f32 %v1311, 0.0
        %v1361 = vmax.f32 %v1313, 0.0
        %v1362 = vmax.f32 %v1315, 0.0
        %v1363 = vmax.f32 %v1319, 0.0
        %v1364 = vmax.f32 %v1321, 0.0
        %v1365 = vmax.f32 %v1323, 0.0
        %v1366 = vmax.f32 %v1325, 0.0
        %v1367 = vld [vmem:[%s4] sm:$0xff]
        %v1368 = vld [vmem:[%s4 + $0x8] sm:$0xff]
        %v1369 = vld [vmem:[%s4 + $0x10] sm:$0xff]
        %v1370 = vld [vmem:[%s4 + $0x18] sm:$0xff]
        %v1371 = vld [vmem:[%s4 + $0x20] sm:$0xff]
        %v1372 = vld [vmem:[%s4 + $0x28] sm:$0xff]
        %v1373 = vpack.c.bf16 %v1329, %v1327
        %v1374 = vpack.c.bf16 %v1330, %v1328
        %v1375 = vpack.c.bf16 %v1333, %v1331
        %v1376 = vpack.c.bf16 %v1334, %v1332
        %v1377 = vpack.c.bf16 %v1337, %v1335
        %v1378 = vpack.c.bf16 %v1338, %v1336
        %v1379 = vpack.c.bf16 %v1341, %v1339
        %v1380 = vpack.c.bf16 %v1342, %v1340
        %v1381 = vpack.c.bf16 %v1345, %v1343
        %v1382 = vpack.c.bf16 %v1346, %v1344
        %v1383 = vpack.c.bf16 %v1349, %v1347
        %v1384 = vpack.c.bf16 %v1350, %v1348
        %v1385 = vpack.c.bf16 %v1353, %v1351
        %v1386 = vpack.c.bf16 %v1354, %v1352
        %v1387 = vpack.c.bf16 %v1357, %v1355
        %v1388 = vpack.c.bf16 %v1358, %v1356
        %v1389 = vpack.c.bf16 %v1361, %v1359
        %v1390 = vpack.c.bf16 %v1362, %v1360
        %v1391 = vpack.c.bf16 %v1365, %v1363
        %v1392 = vpack.c.bf16 %v1366, %v1364
        %v1393 = vld [vmem:[%s5] sm:$0xff]
        %v1394 = vld [vmem:[%s5 + $0x8] sm:$0xff]
        %v1395 = vld [vmem:[%s5 + $0x10] sm:$0xff]
        %v1396 = vld [vmem:[%s5 + $0x18] sm:$0xff]
        %v1397 = vld [vmem:[%s5 + $0x20] sm:$0xff]
        %v1398 = vld [vmem:[%s5 + $0x28] sm:$0xff]
        %1400 = vset.pattern.permute.xlu0 0
        %1401 = vperm.xlu0 %1400, %v1393
        %v1402 = vpop.permute.xlu0 %1401
        %1405 = vset.pattern.permute.xlu0 0
        %1406 = vperm.xlu0 %1405, %v1394
        %v1407 = vpop.permute.xlu0 %1406
        %1410 = vset.pattern.permute.xlu0 0
        %1411 = vperm.xlu0 %1410, %v1395
        %v1412 = vpop.permute.xlu0 %1411
        %1415 = vset.pattern.permute.xlu0 0
        %1416 = vperm.xlu0 %1415, %v1396
        %v1417 = vpop.permute.xlu0 %1416
        %1420 = vset.pattern.permute.xlu0 0
        %1421 = vperm.xlu0 %1420, %v1397
        %v1422 = vpop.permute.xlu0 %1421
        %1425 = vset.pattern.permute.xlu0 0
        %1426 = vperm.xlu0 %1425, %v1398
        %v1427 = vpop.permute.xlu0 %1426
        %v1435 = vunpack.c.l.b16 %v1367
        %v1436 = vunpack.c.h.b16 %v1367
        %v1437 = vunpack.c.l.b16 %v1368
        %v1438 = vunpack.c.h.b16 %v1368
        %v1439 = vunpack.c.l.b16 %v1369
        %v1440 = vunpack.c.h.b16 %v1369
        %v1441 = vunpack.c.l.b16 %v1370
        %v1442 = vunpack.c.h.b16 %v1370
        %v1443 = vunpack.c.l.b16 %v1371
        %v1444 = vunpack.c.h.b16 %v1371
        %v1445 = vunpack.c.l.b16 %v1372
        %v1446 = vunpack.c.h.b16 %v1372
        %v1447 = vpack.c.b16 %v1437, %v1435
        %v1448 = vpack.c.b16 %v1438, %v1436
        %v1449 = vpack.c.b16 %v1441, %v1439
        %v1450 = vpack.c.b16 %v1442, %v1440
        %v1451 = vpack.c.b16 %v1445, %v1443
        %v1452 = vpack.c.b16 %v1446, %v1444
        %v1457 = vsel %vm1030, %v1448, 0
        %v1460 = vsel %vm1030, %v1450, 0
        %v1463 = vsel %vm1030, %v1452, 0
        %1465 = vmatprep.subr.bf16.mxu0 %v1374
        %1466 = vmatpush1.bf16.msra.mxu0 %v1373
        %1467 = vmatprep.subr.bf16.mxu0 %v1376
        %1468 = vmatpush1.bf16.msra.mxu0 %v1375
        %1469 = vmatprep.subr.bf16.mxu0 %v1378
        %1470 = vmatpush1.bf16.msra.mxu0 %v1377
        %1471 = vmatprep.subr.bf16.mxu0 %v1380
        %1472 = vmatpush1.bf16.msra.mxu0 %v1379
        %1473 = vmatprep.subr.bf16.mxu0 %v1382
        %1474 = vmatpush1.bf16.msra.mxu0 %v1381
        %1475 = vmatprep.subr.bf16.mxu0 %v1384
        %1476 = vmatpush1.bf16.msra.mxu0 %v1383
        %1477 = vmatprep.subr.bf16.mxu0 %v1386
        %1478 = vmatpush1.bf16.msra.mxu0 %v1385
        %1479 = vmatprep.subr.bf16.mxu0 %v1388
        %1480 = vmatpush1.bf16.msra.mxu0 %v1387
        %1481 = vmatprep.subr.bf16.mxu0 %v1390
        %1482 = vmatpush1.bf16.msra.mxu0 %v1389
        %1483 = vmatprep.subr.bf16.mxu0 %v1392
        %1484 = vmatpush1.bf16.msra.mxu0 %v1391
        %1485 = vmatprep.subr.bf16.mxu0 0
        %1486 = vmatpush1.bf16.msra.mxu0 0
        %1487 = vmatprep.subr.bf16.mxu0 0
        %1488 = vmatpush1.bf16.msra.mxu0 0
        %1489 = vmatprep.subr.bf16.mxu0 0
        %1490 = vmatpush1.bf16.msra.mxu0 0
        %1491 = vmatprep.subr.bf16.mxu0 0
        %1492 = vmatpush1.bf16.msra.mxu0 0
        %1493 = vmatprep.subr.bf16.mxu0 0
        %1494 = vmatpush1.bf16.msra.mxu0 0
        %1495 = vmatprep.subr.bf16.mxu0 0
        %1496 = vmatpush1.bf16.msra.mxu0 0
        %1497 = vmatprep.mubr.bf16.mxu0 %v1457
        %1498 = vmatmul.mubr.bf16.gmra.mrb[0].mxu0 %v1447
        %v1499 = vpop.f32.mrb[0].mxu0
        %v1500 = vadd.f32 %v1402, %v1499
        %v1501 = vpop.f32.mrb[0].mxu0
        %v1502 = vadd.f32 %v1402, %v1501
        %v1503 = vpop.f32.mrb[0].mxu0
        %v1504 = vadd.f32 %v1407, %v1503
        %v1505 = vpop.f32.mrb[0].mxu0
        %v1506 = vadd.f32 %v1407, %v1505
        %1507 = vmatprep.mubr.bf16.mxu0 %v1460
        %1508 = vmatmul.mubr.bf16.gmra.mrb[0].mxu0 %v1449
        %v1509 = vpop.f32.mrb[0].mxu0
        %v1510 = vadd.f32 %v1412, %v1509
        %v1511 = vpop.f32.mrb[0].mxu0
        %v1512 = vadd.f32 %v1412, %v1511
        %v1513 = vpop.f32.mrb[0].mxu0
        %v1514 = vadd.f32 %v1417, %v1513
        %v1515 = vpop.f32.mrb[0].mxu0
        %v1516 = vadd.f32 %v1417, %v1515
        %1517 = vmatprep.mubr.bf16.mxu0 %v1463
        %1518 = vmatmul.mubr.bf16.gmra.mrb[0].mxu0 %v1451
        %v1519 = vpop.f32.mrb[0].mxu0
        %v1520 = vadd.f32 %v1422, %v1519
        %v1521 = vpop.f32.mrb[0].mxu0
        %v1522 = vadd.f32 %v1422, %v1521
        %v1523 = vpop.f32.mrb[0].mxu0
        %v1524 = vadd.f32 %v1427, %v1523
        %v1525 = vpop.f32.mrb[0].mxu0
        %v1526 = vadd.f32 %v1427, %v1525
        %1527 = vdwg.mxu0
        %v1528 = vpack.c.bf16 %v1504, %v1500
        %v1529 = vpack.c.bf16 %v1506, %v1502
        %v1530 = vpack.c.bf16 %v1514, %v1510
        %v1531 = vpack.c.bf16 %v1516, %v1512
        %v1532 = vpack.c.bf16 %v1520, %v1520
        %v1533 = vpack.c.bf16 %v1522, %v1522
        %v1540 = vunpack.c.l.b16 %v1528
        %v1541 = vunpack.c.l.b16 %v1529
        %v1542 = vunpack.c.h.b16 %v1528
        %v1543 = vunpack.c.h.b16 %v1529
        %v1544 = vunpack.c.l.b16 %v1530
        %v1545 = vunpack.c.l.b16 %v1531
        %v1546 = vunpack.c.h.b16 %v1530
        %v1547 = vunpack.c.h.b16 %v1531
        %v1548 = vunpack.c.l.b16 %v1532
        %v1549 = vunpack.c.l.b16 %v1533
        %v1550 = vpack.c.b16 %v1541, %v1540
        %v1551 = vpack.c.b16 %v1543, %v1542
        %v1552 = vpack.c.b16 %v1545, %v1544
        %v1553 = vpack.c.b16 %v1547, %v1546
        %v1554 = vpack.c.b16 %v1549, %v1548
        %1560 = vst [vmem:[%s289] sm:$0xff] %v1550
        %1561 = vst [vmem:[%s289 + $0x8] sm:$0xff] %v1551
        %1562 = vst [vmem:[%s289 + $0x10] sm:$0xff] %v1552
        %1563 = vst [vmem:[%s289 + $0x18] sm:$0xff] %v1553
        %1564 = vst [vmem:[%s289 + $0x20] sm:$0xff] %v1554
        %v1565 = vlaneseq
        %v1566 = vshrl.u32 %v1565, 7
        %v1567 = vxor.u32 %v1524, 2147483648
        %v1568 = vxor.u32 %v1526, 2147483648
        %v1569 = vmul.f32 %v1567, 1.442695
        %v1570 = vpow.pop %v1569
        %v1571 = vmul.f32 %v1568, 1.442695
        %v1572 = vpow.pop %v1571
        %v1573 = vadd.f32 %v1570, 1.0
        %v1574 = vadd.f32 %v1572, 1.0
        %v1575 = vrcp.pop %v1573
        %v1576 = vmul.f32 1.0, %v1575
        %v1577 = vrcp.pop %v1574
        %v1578 = vmul.f32 1.0, %v1577
        %v1579 = vmax.f32 %v1576, 0.0001
        %v1580 = vmax.f32 %v1578, 0.0001
        %v1581 = vmin.f32 %v1579, 0.9999
        %v1582 = vmin.f32 %v1580, 0.9999
        %vm1583 = vcmp.lt.s32.totalorder %v1566, 2
        %v1584 = vsel %vm1583, %v1581, %v1524
        %v1585 = vsel %vm1583, %v1582, %v1526
        %p1586 = scmp.eq.s32.totalorder %s22, 0
        // Predicated region
        $region45: #{_device_forward.1} parent=43 // pred_check
          %p1587 = pneg %p1586
        $region46: #{_device_forward.1} parent=43 // pred_check_branch
          %1589 = sbr.rel (%p1587) target = $region48
        $region47: #{_device_forward.1} parent=43 // pred_region
          %v1592 = vrot.slane %v1584, 1
          %v1593 = vrot.slane %v1585, 1
          %1596 = vrot.lane.b32.xlu0 %v1592, 1
          %v1597 = vpop.permute.xlu0 %1596
          %1598 = vrot.lane.b32.xlu0 %v1593, 1
          %v1599 = vpop.permute.xlu0 %1598
          %v1600 = vsel %vm474, %v1597, %v1599
          %v1601 = vsel %vm474, %v1599, %v1597
          %v1604 = vcombine.low %v1601, %v1600
          %v1606 = vunpack.c.l.s4 1966171168
          %v1607 = vunpack.c.0.s8 %v1606
          %v1608 = vlaneseq
          %v1609 = vshrl.u32 %v1608, 7
          %v1610 = vsub.s32 %v1607, %v1609
          %v1611 = vrot.slane %v1604, %v1610
          %v1613 = vunpack.c.l.s4 1966171168
          %v1614 = vunpack.c.0.s8 %v1613
          %v1615 = vlaneseq
          %v1616 = vshrl.u32 %v1615, 7
          %v1617 = vsub.s32 %v1614, %v1616
          %v1618 = vrot.slane %v1611, %v1617
          %v1620 = vsel %vm306, %v1618, -inf
          %1621 = vrot.lane.b32.xlu0 %v1592, 127
          %v1622 = vpop.permute.xlu0 %1621
          %1623 = vrot.lane.b32.xlu0 %v1593, 127
          %v1624 = vpop.permute.xlu0 %1623
          %v1625 = vsel %vm522, %v1622, %v1624
          %v1626 = vsel %vm522, %v1624, %v1622
          %v1629 = vcombine.low %v1625, %v1626
          %v1631 = vunpack.c.l.s4 1966171168
          %v1632 = vunpack.c.0.s8 %v1631
          %v1633 = vlaneseq
          %v1634 = vshrl.u32 %v1633, 7
          %v1635 = vsub.s32 %v1632, %v1634
          %v1636 = vrot.slane %v1629, %v1635
          %v1638 = vunpack.c.l.s4 1966171168
          %v1639 = vunpack.c.0.s8 %v1638
          %v1640 = vlaneseq
          %v1641 = vshrl.u32 %v1640, 7
          %v1642 = vsub.s32 %v1639, %v1641
          %v1643 = vrot.slane %v1636, %v1642
          %v1645 = vsel %vm307, %v1643, -inf
          %v1646 = vmax.f32 %v1620, %v1645
          %v1648 = vlaneseq
          %v1649 = vshrl.u32 %v1648, 7
          %v1650 = vsub.s32 0, %v1649
          %v1651 = vrot.slane %v1646, %v1650
          %v1652 = vlaneseq
          %v1653 = vshrl.u32 %v1652, 7
          %v1654 = vsub.s32 1, %v1653
          %v1655 = vrot.slane %v1646, %v1654
          %v1658 = vmax.f32 %v1584, %v1651
          %v1659 = vmax.f32 %v1585, %v1655
          %vm1660 = vcmp.eq.f32.partialorder %v1658, %v1584
          %vm1661 = vcmp.eq.f32.partialorder %v1659, %v1585
          %v1662 = vsel %vm1660, %v1584, 0.0
          %v1663 = vsel %vm1661, %v1585, 0.0
          %vm1664 = vcmp.lt.f32.partialorder %v1584, 1.0
          %vm1665 = vcmp.lt.f32.partialorder %v1585, 1.0
          %vm1666 = vcmp.gt.f32.partialorder %v1662, 0.4
          %vm1667 = vcmp.gt.f32.partialorder %v1663, 0.4
          %v1668 = vsel %vm1666, 1, 0
          %v1669 = vsel %vm1667, 1, 0
          %v1670 = vrot.slane %v1668, 6
          %v1671 = vrot.slane %v1669, 6
          %vm1672 = vcmp.ne.s32.totalorder %v1670, 0
          %vm1673 = vcmp.ne.s32.totalorder %v1671, 0
          %vm1674 = vmand %vm1664, %vm1672
          %vm1675 = vmand %vm1665, %vm1673
          %v1676 = vsel %vm1674, 1, 0
          %v1677 = vsel %vm1675, 1, 0
          %v1678 = vcvt.s32.f32 %v1676
          %v1679 = vcvt.s32.f32 %v1677
          %v1680 = vld [vmem:[%s1] sm:$0xf]
          %v1681 = vld [vmem:[%s1 + $0x8] sm:$0xf]
          %v1682 = vrot.slane %v1584, 2
          %v1683 = vrot.slane %v1585, 2
          %v1686 = vadd.f32 %v1680, %v1682
          %v1687 = vadd.f32 %v1681, %v1683
          %v1690 = vrot.slane %v1662, 1
          %v1691 = vrot.slane %v1663, 1
          %v1696 = vrot.slane %v1678, 2
          %v1697 = vrot.slane %v1679, 2
          %v1702 = vrot.slane %v1686, 6
          %v1703 = vrot.slane %v1687, 6
          %vm1706 = vcmask 1040384
          %v1707 = vsel %vm1706, %v1690, %v1696
          %v1708 = vsel %vm1706, %v1691, %v1697
          %vm1709 = vcmask 1041408
          %v1710 = vsel %vm1709, %v1707, %v1702
          %v1711 = vsel %vm1709, %v1708, %v1703
          %vm1712 = vcmask 1045504
          %v1713 = vsel %vm1712, %v1710, %v1682
          %v1714 = vsel %vm1712, %v1711, %v1683
          %1715 = vst [vmem:[%s279] sm:$0xff] %v1713
          %1716 = vst [vmem:[%s279 + $0x8] sm:$0xff] %v1714
        $region48: #{_device_forward.1} parent=43 // pred_fallthru
          _
        %p1717 = scmp.lt.s32.totalorder %s22, 1
        %s1718 = scalar_select %p1717, %s22, 1
        %s1719 = smul.addr %s1718, 10
        %s1720 = smul.addr %s1719, 4
        %s1721 = scalar_lea.vmem %s6, %s1720
        %s1722 = sand.u32 %s187, 1
        %s1723 = scalar_lea.sflag [#allocation3], %s1722
        %s1724 = sand.u32 %s187, 1
        %s1725 = smul.addr %s1724, 16
        %s1726 = scalar_lea.vmem [#allocation2], %s1725
        // Predicated region
        $region49: #{_device_forward.1} parent=43 // pred_check
          %p1727 = pneg %p171
        $region50: #{_device_forward.1} parent=43 // pred_check_branch
          %1729 = sbr.rel (%p1727) target = $region52
        $region51: #{_device_forward.1} parent=43 // pred_region
          _
        $region52: #{_device_forward.1} parent=43 // pred_fallthru
          _
        // Predicated region
        $region53: #{_device_forward.1} parent=43 // pred_check
          %p1730 = pneg %p197
        $region54: #{_device_forward.1} parent=43 // pred_check_branch
          %1732 = sbr.rel (%p1730) target = $region56
        $region55: #{_device_forward.1} parent=43 // pred_region
          %s1734 = ssub.s32 256, 256
          %1735 = vsyncadd %s1723, %s1734
          %s1736 = smul.addr %s22, 2
          %s1737 = smul.addr %s1736, 128
          %s1738 = scalar_lea.hbm %s7, %s1737
          %s1740 = sshll.u32 %s1726, 4
          %s1741 = int_to_ptr.vmem [resolvable:$true] %s1740
          %1743 = dma.vmem_to_hbm [thread:$0]  %s1741, 256, %s1738, %s1723
        $region56: #{_device_forward.1} parent=43 // pred_fallthru
          _
      $region44: #{_device_forward.1} parent=5 // pred_fallthru
        _
      %p1744 = scmp.le.s32.totalorder 2, %s17
      // Predicated region
      $region57: #{_device_forward.1} parent=5 // pred_check
        %p1745 = pneg %p1744
      $region58: #{_device_forward.1} parent=5 // pred_check_branch
        %1747 = sbr.rel (%p1745) target = $region60
      $region59: #{_device_forward.1} parent=5 // pred_region
        %s1748 = ssub.s32 %s17, 2
        // Predicated region
        $region61: #{_device_forward.1} parent=59 // pred_check
          %p1749 = pneg %p177
        $region62: #{_device_forward.1} parent=59 // pred_check_branch
          %1751 = sbr.rel (%p1749) target = $region64
        $region63: #{_device_forward.1} parent=59 // pred_region
          %p1752 = scmp.lt.s32.totalorder %s23, 1
          %s1753 = scalar_select %p1752, %s23, 1
          %s1754 = smul.addr %s1753, 10
          %s1755 = smul.addr %s1754, 4
          %s1756 = scalar_lea.vmem %s6, %s1755
        $region64: #{_device_forward.1} parent=59 // pred_fallthru
          _
        // Predicated region
        $region65: #{_device_forward.1} parent=59 // pred_check
          %p1757 = pneg %p203
        $region66: #{_device_forward.1} parent=59 // pred_check_branch
          %1759 = sbr.rel (%p1757) target = $region68
        $region67: #{_device_forward.1} parent=59 // pred_region
          %s1760 = sand.u32 %s188, 1
          %s1761 = scalar_lea.sflag [#allocation3], %s1760
          %s1762 = sand.u32 %s188, 1
          %s1763 = smul.addr %s1762, 16
          %s1764 = scalar_lea.vmem [#allocation2], %s1763
          %1765 = dma.done %s1761, 256
        $region68: #{_device_forward.1} parent=59 // pred_fallthru
          _
      $region60: #{_device_forward.1} parent=5 // pred_fallthru
        _
    $region6: #{_device_forward.1} parent=1 // loop_footer
      %s21 = sadd.s32 1, %s17
    $region7: #{_device_forward.1} parent=1 // loop_footer_branch
      %16 = sbr.rel target = $region3
    $region8: #{_device_forward.1} parent=1 // loop_exit
      _
    %1766 = vsyncpa [#allocation3], 1
    %s1767 = scalar_lea.sflag [#allocation3], 1
    %1768 = vsyncpa %s1767, 1

</llo_original>
